<compile_context>
chip_gen: v5e
topology: v5e:2x2
jax: 0.10.0
libtpu: 0.0.40
codegen_flags: <defaults>
</compile_context>

<pallas_src>
import functools

import jax
import jax.numpy as jnp
from jax.experimental import pallas as pl
from jax.experimental.pallas import tpu as pltpu

BN_EPS = 1e-5
VMEM_LIMIT_BYTES = 32 * 1024 * 1024   # explicit scoped-VMEM budget (safe on v5e/v6e/v7x)
TILE_N_TARGET = 2048                  # point rows per tile (prefer multiples of 256)


# ---------------------------------------------------------------------------
# In-kernel helpers
# ---------------------------------------------------------------------------

def _conv1_pre(x, w1_ref, b1_ref):
    """1x1 conv with Cin=3 as three VPU broadcast-FMAs (avoids a K=3 MXU matmul)."""
    w1 = w1_ref[...]                                   # (3, 64) f32
    return (x[:, 0:1] * w1[0:1, :]
            + x[:, 1:2] * w1[1:2, :]
            + x[:, 2:3] * w1[2:3, :]
            + b1_ref[...])                             # (tile_n, 64) f32


def _bn_relu(y, stats_ref, g_ref, t_ref, inv_count):
    """Train-mode BatchNorm (global batch stats) folded to a per-channel scale/shift, then ReLU."""
    mean = stats_ref[0:1, :] * inv_count               # (1, C)
    var = jnp.maximum(stats_ref[1:2, :] * inv_count - mean * mean, 0.0)
    scale = g_ref[...] * jax.lax.rsqrt(var + BN_EPS)
    shift = t_ref[...] - mean * scale
    return jnp.maximum(y * scale + shift, 0.0)


def _accumulate_stats(stats_ref, y):
    """Accumulate per-channel sum / sum-of-squares into a grid-resident (2, C) output."""
    first = jnp.logical_and(pl.program_id(0) == 0, pl.program_id(1) == 0)

    @pl.when(first)
    def _():
        stats_ref[...] = jnp.zeros_like(stats_ref)

    stats_ref[0:1, :] = stats_ref[0:1, :] + jnp.sum(y, axis=0, keepdims=True)
    stats_ref[1:2, :] = stats_ref[1:2, :] + jnp.sum(y * y, axis=0, keepdims=True)


# ---------------------------------------------------------------------------
# Kernels (one per pass)
# ---------------------------------------------------------------------------

def _conv1_stats_kernel(pc_ref, w1_ref, b1_ref, stats1_ref):
    x = pc_ref[0]                                      # (tile_n, 3)
    y1 = _conv1_pre(x, w1_ref, b1_ref)                 # (tile_n, 64)
    _accumulate_stats(stats1_ref, y1)


def _conv2_kernel(inv_count, pc_ref, w1_ref, b1_ref, stats1_ref, g1_ref, t1_ref,
                  w2_ref, b2_ref, y2_ref, stats2_ref):
    x = pc_ref[0]                                      # (tile_n, 3)
    h1 = _bn_relu(_conv1_pre(x, w1_ref, b1_ref), stats1_ref, g1_ref, t1_ref, inv_count)
    y2 = jnp.dot(h1.astype(jnp.bfloat16), w2_ref[...],
                 preferred_element_type=jnp.float32) + b2_ref[...]
    y2_ref[0] = y2
    _accumulate_stats(stats2_ref, y2)


def _bn_relu_conv_stats_kernel(inv_count, y_in_ref, stats_in_ref, g_ref, t_ref,
                               w_ref, b_ref, y_out_ref, stats_out_ref):
    h = _bn_relu(y_in_ref[0], stats_in_ref, g_ref, t_ref, inv_count)      # (tile_n, Cin)
    y = jnp.dot(h.astype(jnp.bfloat16), w_ref[...],
                preferred_element_type=jnp.float32) + b_ref[...]          # (tile_n, Cout)
    y_out_ref[0] = y
    _accumulate_stats(stats_out_ref, y)


def _bn_relu_max_mlp2mu_kernel(inv_count, y_in_ref, stats_in_ref, g_ref, t_ref,
                               wmu_ref, bmu_ref, out_ref, feat_acc):
    h = _bn_relu(y_in_ref[0], stats_in_ref, g_ref, t_ref, inv_count)      # (tile_n, F)
    tile_max = jnp.max(h, axis=0, keepdims=True)                          # (1, F)
    t = pl.program_id(1)

    @pl.when(t == 0)
    def _():
        feat_acc[...] = tile_max

    @pl.when(t > 0)
    def _():
        feat_acc[...] = jnp.maximum(feat_acc[...], tile_max)

    @pl.when(t == pl.num_programs(1) - 1)
    def _():
        # Sampler with probabilistic=False -> just mlp2mu, fused into the last tile.
        out_ref[0] = (jnp.dot(feat_acc[...].astype(jnp.bfloat16), wmu_ref[...],
                              preferred_element_type=jnp.float32) + bmu_ref[...])


# ---------------------------------------------------------------------------
# Wrapper
# ---------------------------------------------------------------------------

def _choose_tile_n(n, target=TILE_N_TARGET):
    """Largest point tile <= target that divides n; prefer multiples of 256, then 8."""
    if n <= target:
        return n
    best_8 = None
    t = target
    while t >= 8:
        if n % t == 0:
            if t % 256 == 0:
                return t
            if best_8 is None and t % 8 == 0:
                best_8 = t
        t -= 1
    return best_8 if best_8 is not None else n


def part_encoder_forward(pc, params):
    """pc: (B, N, 3) float32 point cloud.  Returns (B, feat_len) float32."""
    B, N, _ = pc.shape
    feat_len = params["wmu"].shape[1]
    tile_n = _choose_tile_n(N)
    assert N % tile_n == 0
    grid = (B, N // tile_n)
    inv_count = 1.0 / float(B * N)

    def tiled(c):
        return pl.BlockSpec((1, tile_n, c), lambda b, t: (b, t, 0))

    def whole(shape):
        nd = len(shape)
        return pl.BlockSpec(tuple(shape), lambda b, t: (0,) * nd)

    # Stats outputs are revisited across the whole grid -> both axes "arbitrary".
    cp_reduce = pltpu.CompilerParams(
        dimension_semantics=("arbitrary", "arbitrary"),
        vmem_limit_bytes=VMEM_LIMIT_BYTES)
    # Final pass: batch axis is independent (megacore-shardable), point-tile axis reduces.
    cp_final = pltpu.CompilerParams(
        dimension_semantics=("parallel", "arbitrary"),
        vmem_limit_bytes=VMEM_LIMIT_BYTES)

    w1, b1 = params["w1"], params["b1"]
    g1, t1 = params["g1"], params["t1"]
    # bf16 operands for all MXU matmuls (f32 accumulation); conv1 and all BN/ReLU stay f32.
    w2 = params["w2"].astype(jnp.bfloat16)
    w3 = params["w3"].astype(jnp.bfloat16)
    w4 = params["w4"].astype(jnp.bfloat16)
    wmu = params["wmu"].astype(jnp.bfloat16)

    # Pass 1: BN1 statistics of conv1(pc).
    stats1 = pl.pallas_call(
        _conv1_stats_kernel,
        out_shape=jax.ShapeDtypeStruct((2, 64), jnp.float32),
        grid=grid,
        in_specs=[tiled(3), whole(w1.shape), whole(b1.shape)],
        out_specs=whole((2, 64)),
        compiler_params=cp_reduce,
    )(pc, w1, b1)

    # Pass 2: bn1+relu (conv1 recomputed on the fly -> no (B, N, 64) HBM round trip),
    # conv2, plus BN2 statistics.
    y2, stats2 = pl.pallas_call(
        functools.partial(_conv2_kernel, inv_count),
        out_shape=(jax.ShapeDtypeStruct((B, N, 128), jnp.float32),
                   jax.ShapeDtypeStruct((2, 128), jnp.float32)),
        grid=grid,
        in_specs=[tiled(3), whole(w1.shape), whole(b1.shape), whole(stats1.shape),
                  whole(g1.shape), whole(t1.shape), whole(w2.shape),
                  whole(params["b2"].shape)],
        out_specs=(tiled(128), whole((2, 128))),
        compiler_params=cp_reduce,
    )(pc, w1, b1, stats1, g1, t1, w2, params["b2"])

    def mid_pass(y_in, stats_in, g, t, w, b):
        c_in = y_in.shape[-1]
        c_out = w.shape[1]
        return pl.pallas_call(
            functools.partial(_bn_relu_conv_stats_kernel, inv_count),
            out_shape=(jax.ShapeDtypeStruct((B, N, c_out), jnp.float32),
                       jax.ShapeDtypeStruct((2, c_out), jnp.float32)),
            grid=grid,
            in_specs=[tiled(c_in), whole(stats_in.shape), whole(g.shape),
                      whole(t.shape), whole(w.shape), whole(b.shape)],
            out_specs=(tiled(c_out), whole((2, c_out))),
            compiler_params=cp_reduce,
        )(y_in, stats_in, g, t, w, b)

    # Pass 3: bn2+relu -> conv3 (+ BN3 stats).   Pass 4: bn3+relu -> conv4 (+ BN4 stats).
    y3, stats3 = mid_pass(y2, stats2, params["g2"], params["t2"], w3, params["b3"])
    y4, stats4 = mid_pass(y3, stats3, params["g3"], params["t3"], w4, params["b4"])

    # Pass 5: bn4+relu, running max over points per shape, mlp2mu fused at the last tile.
    out = pl.pallas_call(
        functools.partial(_bn_relu_max_mlp2mu_kernel, inv_count),
        out_shape=jax.ShapeDtypeStruct((B, 1, feat_len), jnp.float32),
        grid=grid,
        in_specs=[tiled(feat_len), whole(stats4.shape), whole(params["g4"].shape),
                  whole(params["t4"].shape), whole(wmu.shape), whole(params["bmu"].shape)],
        out_specs=pl.BlockSpec((1, 1, feat_len), lambda b, t: (b, 0, 0)),
        scratch_shapes=[pltpu.VMEM((1, feat_len), jnp.float32)],
        compiler_params=cp_final,
    )(y4, stats4, params["g4"], params["t4"], wmu, params["bmu"])

    # TODO(synk): probabilistic=True branch of PartFeatSampler (reparameterized sampling +
    # KLD concat) is not implemented; the module default is probabilistic=False.
    return out.reshape(B, feat_len)


# ---------------------------------------------------------------------------
# Synthetic parameters + pure-JAX reference (mirrors the kernel's bf16 MXU operands)
# ---------------------------------------------------------------------------

def make_params(key, feat_len):
    """Deterministic synthetic parameters matching the PyTorch module's shapes."""
    dims = [(3, 64), (64, 128), (128, 128), (128, feat_len)]
    keys = jax.random.split(key, 4 * 4 + 2)
    params = {}
    ki = 0
    for idx, (cin, cout) in enumerate(dims, start=1):
        bound = 1.0 / jnp.sqrt(cin)
        params[f"w{idx}"] = jax.random.uniform(keys[ki], (cin, cout), jnp.float32,
                                               -bound, bound); ki += 1
        params[f"b{idx}"] = jax.random.uniform(keys[ki], (1, cout), jnp.float32,
                                               -bound, bound); ki += 1
        params[f"g{idx}"] = 1.0 + 0.1 * jax.random.normal(keys[ki], (1, cout),
                                                          jnp.float32); ki += 1
        params[f"t{idx}"] = 0.1 * jax.random.normal(keys[ki], (1, cout),
                                                    jnp.float32); ki += 1
    bound = 1.0 / jnp.sqrt(feat_len)
    params["wmu"] = jax.random.uniform(keys[ki], (feat_len, feat_len), jnp.float32,
                                       -bound, bound); ki += 1
    params["bmu"] = jax.random.uniform(keys[ki], (1, feat_len), jnp.float32,
                                       -bound, bound); ki += 1
    return params


def part_encoder_reference(pc, params):
    """Pure-JAX reference mirroring the kernel numerics (bf16 MXU operands, f32 accumulation)."""
    B, N, _ = pc.shape
    h = pc.reshape(B * N, 3).astype(jnp.float32)
    for idx in range(1, 5):
        w, b = params[f"w{idx}"], params[f"b{idx}"]
        if idx == 1:
            y = h @ w + b                                # conv1 stays f32 (VPU path in kernel)
        else:
            y = jnp.dot(h.astype(jnp.bfloat16), w.astype(jnp.bfloat16),
                        preferred_element_type=jnp.float32) + b
        mean = jnp.mean(y, axis=0, keepdims=True)
        var = jnp.mean((y - mean) ** 2, axis=0, keepdims=True)
        h = jnp.maximum((y - mean) / jnp.sqrt(var + BN_EPS) * params[f"g{idx}"]
                        + params[f"t{idx}"], 0.0)
    feat = jnp.max(h.reshape(B, N, -1), axis=1)
    return jnp.dot(feat.astype(jnp.bfloat16), params["wmu"].astype(jnp.bfloat16),
                   preferred_element_type=jnp.float32) + params["bmu"]


if __name__ == "__main__":
    B, N, FEAT_LEN = 2, 16, 128
    key = jax.random.PRNGKey(0)
    k_pc, k_par = jax.random.split(key)
    pc = jax.random.normal(k_pc, (B, N, 3), jnp.float32)
    params = make_params(k_par, FEAT_LEN)

    out = jax.jit(part_encoder_forward)(pc, params)
    out = jax.block_until_ready(out)

    ref = part_encoder_reference(pc, params)
    assert out.shape == (B, FEAT_LEN)
    max_err = jnp.max(jnp.abs(out - ref))
    assert jnp.allclose(out, ref, atol=2e-2, rtol=2e-2), f"mismatch vs reference, max abs err {max_err}"
    print("KERNEL_OK")
</pallas_src>

<mosaic_0001>
module attributes {stable_mosaic.version = 11 : i64} {
  func.func @_conv1_stats_kernel(%arg0: i32, %arg1: i32, %arg2: memref<1x16x3xf32, #tpu.memory_space<vmem>>, %arg3: memref<3x64xf32, #tpu.memory_space<vmem>>, %arg4: memref<1x64xf32, #tpu.memory_space<vmem>>, %arg5: memref<2x64xf32, #tpu.memory_space<vmem>>) attributes {dimension_semantics = [#tpu.dimension_semantics<arbitrary>, #tpu.dimension_semantics<arbitrary>], iteration_bounds = array<i64: 2, 1>, scalar_prefetch = 0 : i64, scratch_operands = 0 : i64, tpu.core_type = #tpu.core_type<tc>, window_params = [{transform_indices = @transform_0, window_bounds = array<i64: 1, 16, 3>}, {pipeline_mode = #tpu.pipeline_mode<synchronous>, transform_indices = @transform_1, window_bounds = array<i64: 3, 64>}, {pipeline_mode = #tpu.pipeline_mode<synchronous>, transform_indices = @transform_2, window_bounds = array<i64: 1, 64>}, {pipeline_mode = #tpu.pipeline_mode<synchronous>, transform_indices = @transform_3, window_bounds = array<i64: 2, 64>}]} {
    %c0 = arith.constant 0 : index
    %c0_0 = arith.constant 0 : index
    %c0_1 = arith.constant 0 : index
    %0 = vector.load %arg2[%c0, %c0_0, %c0_1] : memref<1x16x3xf32, #tpu.memory_space<vmem>>, vector<1x16x3xf32>
    %1 = vector.shape_cast %0 : vector<1x16x3xf32> to vector<16x3xf32>
    %c0_2 = arith.constant 0 : index
    %c0_3 = arith.constant 0 : index
    %2 = vector.load %arg3[%c0_2, %c0_3] : memref<3x64xf32, #tpu.memory_space<vmem>>, vector<3x64xf32>
    %3 = vector.extract_strided_slice %1 {offsets = [0, 0], sizes = [16, 1], strides = [1, 1]} : vector<16x3xf32> to vector<16x1xf32>
    %4 = vector.extract_strided_slice %2 {offsets = [0, 0], sizes = [1, 64], strides = [1, 1]} : vector<3x64xf32> to vector<1x64xf32>
    %5 = vector.broadcast %3 : vector<16x1xf32> to vector<16x64xf32>
    %6 = vector.broadcast %4 : vector<1x64xf32> to vector<16x64xf32>
    %7 = arith.mulf %5, %6 : vector<16x64xf32>
    %8 = vector.extract_strided_slice %1 {offsets = [0, 1], sizes = [16, 1], strides = [1, 1]} : vector<16x3xf32> to vector<16x1xf32>
    %9 = vector.extract_strided_slice %2 {offsets = [1, 0], sizes = [1, 64], strides = [1, 1]} : vector<3x64xf32> to vector<1x64xf32>
    %10 = vector.broadcast %8 : vector<16x1xf32> to vector<16x64xf32>
    %11 = vector.broadcast %9 : vector<1x64xf32> to vector<16x64xf32>
    %12 = arith.mulf %10, %11 : vector<16x64xf32>
    %13 = arith.addf %7, %12 : vector<16x64xf32>
    %14 = vector.extract_strided_slice %1 {offsets = [0, 2], sizes = [16, 1], strides = [1, 1]} : vector<16x3xf32> to vector<16x1xf32>
    %15 = vector.extract_strided_slice %2 {offsets = [2, 0], sizes = [1, 64], strides = [1, 1]} : vector<3x64xf32> to vector<1x64xf32>
    %16 = vector.broadcast %14 : vector<16x1xf32> to vector<16x64xf32>
    %17 = vector.broadcast %15 : vector<1x64xf32> to vector<16x64xf32>
    %18 = arith.mulf %16, %17 : vector<16x64xf32>
    %19 = arith.addf %13, %18 : vector<16x64xf32>
    %c0_4 = arith.constant 0 : index
    %c0_5 = arith.constant 0 : index
    %20 = vector.load %arg4[%c0_4, %c0_5] : memref<1x64xf32, #tpu.memory_space<vmem>>, vector<1x64xf32>
    %21 = vector.broadcast %20 : vector<1x64xf32> to vector<16x64xf32>
    %22 = arith.addf %19, %21 : vector<16x64xf32>
    %c0_i32 = arith.constant 0 : i32
    %23 = arith.cmpi eq, %arg0, %c0_i32 : i32
    %c0_i32_6 = arith.constant 0 : i32
    %24 = arith.cmpi eq, %arg1, %c0_i32_6 : i32
    %25 = arith.andi %23, %24 : i1
    %26 = arith.extui %25 : i1 to i32
    %c0_i32_7 = arith.constant 0 : i32
    %27 = arith.cmpi ne, %26, %c0_i32_7 : i32
    scf.if %27 {
      %cst_16 = arith.constant 0.000000e+00 : f32
      %39 = vector.broadcast %cst_16 : f32 to vector<2x64xf32>
      %c0_17 = arith.constant 0 : index
      %c0_18 = arith.constant 0 : index
      %40 = vector.load %arg5[%c0_17, %c0_18] : memref<2x64xf32, #tpu.memory_space<vmem>>, vector<2x64xf32>
      tpu.vector_store %arg5[%c0_17, %c0_18], %39 {strides = array<i32>} : memref<2x64xf32, #tpu.memory_space<vmem>>, vector<2x64xf32>,
    } else {
    }
    %c0_8 = arith.constant 0 : index
    %c0_9 = arith.constant 0 : index
    %28 = vector.load %arg5[%c0_8, %c0_9] : memref<2x64xf32, #tpu.memory_space<vmem>>, vector<1x64xf32>
    %cst = arith.constant dense<0.000000e+00> : vector<64xf32>
    %29 = vector.multi_reduction <add>, %22, %cst [0] : vector<16x64xf32> to vector<64xf32>
    %30 = vector.shape_cast %29 : vector<64xf32> to vector<1x64xf32>
    %31 = arith.addf %28, %30 : vector<1x64xf32>
    %c0_10 = arith.constant 0 : index
    %c0_11 = arith.constant 0 : index
    %32 = vector.load %arg5[%c0_10, %c0_11] : memref<2x64xf32, #tpu.memory_space<vmem>>, vector<1x64xf32>
    tpu.vector_store %arg5[%c0_10, %c0_11], %31 {strides = array<i32>} : memref<2x64xf32, #tpu.memory_space<vmem>>, vector<1x64xf32>,
    %c1 = arith.constant 1 : index
    %c0_12 = arith.constant 0 : index
    %33 = vector.load %arg5[%c1, %c0_12] : memref<2x64xf32, #tpu.memory_space<vmem>>, vector<1x64xf32>
    %34 = arith.mulf %22, %22 : vector<16x64xf32>
    %cst_13 = arith.constant dense<0.000000e+00> : vector<64xf32>
    %35 = vector.multi_reduction <add>, %34, %cst_13 [0] : vector<16x64xf32> to vector<64xf32>
    %36 = vector.shape_cast %35 : vector<64xf32> to vector<1x64xf32>
    %37 = arith.addf %33, %36 : vector<1x64xf32>
    %c1_14 = arith.constant 1 : index
    %c0_15 = arith.constant 0 : index
    %38 = vector.load %arg5[%c1_14, %c0_15] : memref<2x64xf32, #tpu.memory_space<vmem>>, vector<1x64xf32>
    tpu.vector_store %arg5[%c1_14, %c0_15], %37 {strides = array<i32>} : memref<2x64xf32, #tpu.memory_space<vmem>>, vector<1x64xf32>,
    return
  }
  func.func @transform_0(%arg0: i32, %arg1: i32) -> (i32, i32, i32) {
    %c0_i32 = arith.constant 0 : i32
    %c0_i32_0 = arith.constant 0 : i32
    return %arg0, %arg1, %c0_i32 : i32, i32, i32
  }
  func.func @transform_1(%arg0: i32, %arg1: i32) -> (i32, i32) {
    %c0_i32 = arith.constant 0 : i32
    %c0_i32_0 = arith.constant 0 : i32
    %c0_i32_1 = arith.constant 0 : i32
    return %c0_i32, %c0_i32_0 : i32, i32
  }
  func.func @transform_2(%arg0: i32, %arg1: i32) -> (i32, i32) {
    %c0_i32 = arith.constant 0 : i32
    %c0_i32_0 = arith.constant 0 : i32
    %c0_i32_1 = arith.constant 0 : i32
    return %c0_i32, %c0_i32_0 : i32, i32
  }
  func.func @transform_3(%arg0: i32, %arg1: i32) -> (i32, i32) {
    %c0_i32 = arith.constant 0 : i32
    %c0_i32_0 = arith.constant 0 : i32
    %c0_i32_1 = arith.constant 0 : i32
    return %c0_i32, %c0_i32_0 : i32, i32
  }
}

module attributes {stable_mosaic.version = 11 : i64} {
  func.func @_conv2_kernel(%arg0: i32, %arg1: i32, %arg2: memref<1x16x3xf32, #tpu.memory_space<vmem>>, %arg3: memref<3x64xf32, #tpu.memory_space<vmem>>, %arg4: memref<1x64xf32, #tpu.memory_space<vmem>>, %arg5: memref<2x64xf32, #tpu.memory_space<vmem>>, %arg6: memref<1x64xf32, #tpu.memory_space<vmem>>, %arg7: memref<1x64xf32, #tpu.memory_space<vmem>>, %arg8: memref<64x128xbf16, #tpu.memory_space<vmem>>, %arg9: memref<1x128xf32, #tpu.memory_space<vmem>>, %arg10: memref<1x16x128xf32, #tpu.memory_space<vmem>>, %arg11: memref<2x128xf32, #tpu.memory_space<vmem>>) attributes {dimension_semantics = [#tpu.dimension_semantics<arbitrary>, #tpu.dimension_semantics<arbitrary>], iteration_bounds = array<i64: 2, 1>, scalar_prefetch = 0 : i64, scratch_operands = 0 : i64, tpu.core_type = #tpu.core_type<tc>, window_params = [{transform_indices = @transform_0, window_bounds = array<i64: 1, 16, 3>}, {pipeline_mode = #tpu.pipeline_mode<synchronous>, transform_indices = @transform_1, window_bounds = array<i64: 3, 64>}, {pipeline_mode = #tpu.pipeline_mode<synchronous>, transform_indices = @transform_2, window_bounds = array<i64: 1, 64>}, {pipeline_mode = #tpu.pipeline_mode<synchronous>, transform_indices = @transform_3, window_bounds = array<i64: 2, 64>}, {pipeline_mode = #tpu.pipeline_mode<synchronous>, transform_indices = @transform_4, window_bounds = array<i64: 1, 64>}, {pipeline_mode = #tpu.pipeline_mode<synchronous>, transform_indices = @transform_5, window_bounds = array<i64: 1, 64>}, {pipeline_mode = #tpu.pipeline_mode<synchronous>, transform_indices = @transform_6, window_bounds = array<i64: 64, 128>}, {pipeline_mode = #tpu.pipeline_mode<synchronous>, transform_indices = @transform_7, window_bounds = array<i64: 1, 128>}, {transform_indices = @transform_8, window_bounds = array<i64: 1, 16, 128>}, {pipeline_mode = #tpu.pipeline_mode<synchronous>, transform_indices = @transform_9, window_bounds = array<i64: 2, 128>}]} {
    %c0 = arith.constant 0 : index
    %c0_0 = arith.constant 0 : index
    %c0_1 = arith.constant 0 : index
    %0 = vector.load %arg2[%c0, %c0_0, %c0_1] : memref<1x16x3xf32, #tpu.memory_space<vmem>>, vector<1x16x3xf32>
    %1 = vector.shape_cast %0 : vector<1x16x3xf32> to vector<16x3xf32>
    %c0_2 = arith.constant 0 : index
    %c0_3 = arith.constant 0 : index
    %2 = vector.load %arg3[%c0_2, %c0_3] : memref<3x64xf32, #tpu.memory_space<vmem>>, vector<3x64xf32>
    %3 = vector.extract_strided_slice %1 {offsets = [0, 0], sizes = [16, 1], strides = [1, 1]} : vector<16x3xf32> to vector<16x1xf32>
    %4 = vector.extract_strided_slice %2 {offsets = [0, 0], sizes = [1, 64], strides = [1, 1]} : vector<3x64xf32> to vector<1x64xf32>
    %5 = vector.broadcast %3 : vector<16x1xf32> to vector<16x64xf32>
    %6 = vector.broadcast %4 : vector<1x64xf32> to vector<16x64xf32>
    %7 = arith.mulf %5, %6 : vector<16x64xf32>
    %8 = vector.extract_strided_slice %1 {offsets = [0, 1], sizes = [16, 1], strides = [1, 1]} : vector<16x3xf32> to vector<16x1xf32>
    %9 = vector.extract_strided_slice %2 {offsets = [1, 0], sizes = [1, 64], strides = [1, 1]} : vector<3x64xf32> to vector<1x64xf32>
    %10 = vector.broadcast %8 : vector<16x1xf32> to vector<16x64xf32>
    %11 = vector.broadcast %9 : vector<1x64xf32> to vector<16x64xf32>
    %12 = arith.mulf %10, %11 : vector<16x64xf32>
    %13 = arith.addf %7, %12 : vector<16x64xf32>
    %14 = vector.extract_strided_slice %1 {offsets = [0, 2], sizes = [16, 1], strides = [1, 1]} : vector<16x3xf32> to vector<16x1xf32>
    %15 = vector.extract_strided_slice %2 {offsets = [2, 0], sizes = [1, 64], strides = [1, 1]} : vector<3x64xf32> to vector<1x64xf32>
    %16 = vector.broadcast %14 : vector<16x1xf32> to vector<16x64xf32>
    %17 = vector.broadcast %15 : vector<1x64xf32> to vector<16x64xf32>
    %18 = arith.mulf %16, %17 : vector<16x64xf32>
    %19 = arith.addf %13, %18 : vector<16x64xf32>
    %c0_4 = arith.constant 0 : index
    %c0_5 = arith.constant 0 : index
    %20 = vector.load %arg4[%c0_4, %c0_5] : memref<1x64xf32, #tpu.memory_space<vmem>>, vector<1x64xf32>
    %21 = vector.broadcast %20 : vector<1x64xf32> to vector<16x64xf32>
    %22 = arith.addf %19, %21 : vector<16x64xf32>
    %c0_6 = arith.constant 0 : index
    %c0_7 = arith.constant 0 : index
    %23 = vector.load %arg5[%c0_6, %c0_7] : memref<2x64xf32, #tpu.memory_space<vmem>>, vector<1x64xf32>
    %cst = arith.constant 3.125000e-02 : f32
    %24 = vector.broadcast %cst : f32 to vector<1x64xf32>
    %25 = arith.mulf %23, %24 : vector<1x64xf32>
    %c1 = arith.constant 1 : index
    %c0_8 = arith.constant 0 : index
    %26 = vector.load %arg5[%c1, %c0_8] : memref<2x64xf32, #tpu.memory_space<vmem>>, vector<1x64xf32>
    %cst_9 = arith.constant 3.125000e-02 : f32
    %27 = vector.broadcast %cst_9 : f32 to vector<1x64xf32>
    %28 = arith.mulf %26, %27 : vector<1x64xf32>
    %29 = arith.mulf %25, %25 : vector<1x64xf32>
    %30 = arith.subf %28, %29 : vector<1x64xf32>
    %cst_10 = arith.constant 0.000000e+00 : f32
    %31 = vector.broadcast %cst_10 : f32 to vector<1x64xf32>
    %32 = arith.maximumf %30, %31 : vector<1x64xf32>
    %c0_11 = arith.constant 0 : index
    %c0_12 = arith.constant 0 : index
    %33 = vector.load %arg6[%c0_11, %c0_12] : memref<1x64xf32, #tpu.memory_space<vmem>>, vector<1x64xf32>
    %cst_13 = arith.constant 9.99999974E-6 : f32
    %34 = vector.broadcast %cst_13 : f32 to vector<1x64xf32>
    %35 = arith.addf %32, %34 : vector<1x64xf32>
    %36 = math.rsqrt %35 : vector<1x64xf32>
    %37 = arith.mulf %33, %36 : vector<1x64xf32>
    %c0_14 = arith.constant 0 : index
    %c0_15 = arith.constant 0 : index
    %38 = vector.load %arg7[%c0_14, %c0_15] : memref<1x64xf32, #tpu.memory_space<vmem>>, vector<1x64xf32>
    %39 = arith.mulf %25, %37 : vector<1x64xf32>
    %40 = arith.subf %38, %39 : vector<1x64xf32>
    %41 = vector.broadcast %37 : vector<1x64xf32> to vector<16x64xf32>
    %42 = arith.mulf %22, %41 : vector<16x64xf32>
    %43 = vector.broadcast %40 : vector<1x64xf32> to vector<16x64xf32>
    %44 = arith.addf %42, %43 : vector<16x64xf32>
    %cst_16 = arith.constant 0.000000e+00 : f32
    %45 = vector.broadcast %cst_16 : f32 to vector<16x64xf32>
    %46 = arith.maximumf %44, %45 : vector<16x64xf32>
    %47 = arith.truncf %46 : vector<16x64xf32> to vector<16x64xbf16>
    %c0_17 = arith.constant 0 : index
    %c0_18 = arith.constant 0 : index
    %48 = vector.load %arg8[%c0_17, %c0_18] : memref<64x128xbf16, #tpu.memory_space<vmem>>, vector<64x128xbf16>
    %cst_19 = arith.constant dense<0.000000e+00> : vector<16x128xf32>
    %49 = tpu.matmul %47, %48, %cst_19 {dimension_numbers = #tpu.dot_dimension_numbers<[1], [0], [0], [1], [0, 0, 1, 1], [], []>} : vector<16x64xbf16>, vector<64x128xbf16>, vector<16x128xf32> -> vector<16x128xf32>
    %c0_20 = arith.constant 0 : index
    %c0_21 = arith.constant 0 : index
    %50 = vector.load %arg9[%c0_20, %c0_21] : memref<1x128xf32, #tpu.memory_space<vmem>>, vector<1x128xf32>
    %51 = vector.broadcast %50 : vector<1x128xf32> to vector<16x128xf32>
    %52 = arith.addf %49, %51 : vector<16x128xf32>
    %c0_22 = arith.constant 0 : index
    %c0_23 = arith.constant 0 : index
    %c0_24 = arith.constant 0 : index
    %53 = vector.load %arg10[%c0_22, %c0_23, %c0_24] : memref<1x16x128xf32, #tpu.memory_space<vmem>>, vector<1x16x128xf32>
    %54 = vector.shape_cast %53 : vector<1x16x128xf32> to vector<16x128xf32>
    %55 = vector.shape_cast %52 : vector<16x128xf32> to vector<1x16x128xf32>
    tpu.vector_store %arg10[%c0_22, %c0_23, %c0_24], %55 {strides = array<i32>} : memref<1x16x128xf32, #tpu.memory_space<vmem>>, vector<1x16x128xf32>,
    %c0_i32 = arith.constant 0 : i32
    %56 = arith.cmpi eq, %arg0, %c0_i32 : i32
    %c0_i32_25 = arith.constant 0 : i32
    %57 = arith.cmpi eq, %arg1, %c0_i32_25 : i32
    %58 = arith.andi %56, %57 : i1
    %59 = arith.extui %58 : i1 to i32
    %c0_i32_26 = arith.constant 0 : i32
    %60 = arith.cmpi ne, %59, %c0_i32_26 : i32
    scf.if %60 {
      %cst_37 = arith.constant 0.000000e+00 : f32
      %72 = vector.broadcast %cst_37 : f32 to vector<2x128xf32>
      %c0_38 = arith.constant 0 : index
      %c0_39 = arith.constant 0 : index
      %73 = vector.load %arg11[%c0_38, %c0_39] : memref<2x128xf32, #tpu.memory_space<vmem>>, vector<2x128xf32>
      tpu.vector_store %arg11[%c0_38, %c0_39], %72 {strides = array<i32>} : memref<2x128xf32, #tpu.memory_space<vmem>>, vector<2x128xf32>,
    } else {
    }
    %c0_27 = arith.constant 0 : index
    %c0_28 = arith.constant 0 : index
    %61 = vector.load %arg11[%c0_27, %c0_28] : memref<2x128xf32, #tpu.memory_space<vmem>>, vector<1x128xf32>
    %cst_29 = arith.constant dense<0.000000e+00> : vector<128xf32>
    %62 = vector.multi_reduction <add>, %52, %cst_29 [0] : vector<16x128xf32> to vector<128xf32>
    %63 = vector.shape_cast %62 : vector<128xf32> to vector<1x128xf32>
    %64 = arith.addf %61, %63 : vector<1x128xf32>
    %c0_30 = arith.constant 0 : index
    %c0_31 = arith.constant 0 : index
    %65 = vector.load %arg11[%c0_30, %c0_31] : memref<2x128xf32, #tpu.memory_space<vmem>>, vector<1x128xf32>
    tpu.vector_store %arg11[%c0_30, %c0_31], %64 {strides = array<i32>} : memref<2x128xf32, #tpu.memory_space<vmem>>, vector<1x128xf32>,
    %c1_32 = arith.constant 1 : index
    %c0_33 = arith.constant 0 : index
    %66 = vector.load %arg11[%c1_32, %c0_33] : memref<2x128xf32, #tpu.memory_space<vmem>>, vector<1x128xf32>
    %67 = arith.mulf %52, %52 : vector<16x128xf32>
    %cst_34 = arith.constant dense<0.000000e+00> : vector<128xf32>
    %68 = vector.multi_reduction <add>, %67, %cst_34 [0] : vector<16x128xf32> to vector<128xf32>
    %69 = vector.shape_cast %68 : vector<128xf32> to vector<1x128xf32>
    %70 = arith.addf %66, %69 : vector<1x128xf32>
    %c1_35 = arith.constant 1 : index
    %c0_36 = arith.constant 0 : index
    %71 = vector.load %arg11[%c1_35, %c0_36] : memref<2x128xf32, #tpu.memory_space<vmem>>, vector<1x128xf32>
    tpu.vector_store %arg11[%c1_35, %c0_36], %70 {strides = array<i32>} : memref<2x128xf32, #tpu.memory_space<vmem>>, vector<1x128xf32>,
    return
  }
  func.func @transform_0(%arg0: i32, %arg1: i32) -> (i32, i32, i32) {
    %c0_i32 = arith.constant 0 : i32
    %c0_i32_0 = arith.constant 0 : i32
    return %arg0, %arg1, %c0_i32 : i32, i32, i32
  }
  func.func @transform_1(%arg0: i32, %arg1: i32) -> (i32, i32) {
    %c0_i32 = arith.constant 0 : i32
    %c0_i32_0 = arith.constant 0 : i32
    %c0_i32_1 = arith.constant 0 : i32
    return %c0_i32, %c0_i32_0 : i32, i32
  }
  func.func @transform_2(%arg0: i32, %arg1: i32) -> (i32, i32) {
    %c0_i32 = arith.constant 0 : i32
    %c0_i32_0 = arith.constant 0 : i32
    %c0_i32_1 = arith.constant 0 : i32
    return %c0_i32, %c0_i32_0 : i32, i32
  }
  func.func @transform_3(%arg0: i32, %arg1: i32) -> (i32, i32) {
    %c0_i32 = arith.constant 0 : i32
    %c0_i32_0 = arith.constant 0 : i32
    %c0_i32_1 = arith.constant 0 : i32
    return %c0_i32, %c0_i32_0 : i32, i32
  }
  func.func @transform_4(%arg0: i32, %arg1: i32) -> (i32, i32) {
    %c0_i32 = arith.constant 0 : i32
    %c0_i32_0 = arith.constant 0 : i32
    %c0_i32_1 = arith.constant 0 : i32
    return %c0_i32, %c0_i32_0 : i32, i32
  }
  func.func @transform_5(%arg0: i32, %arg1: i32) -> (i32, i32) {
    %c0_i32 = arith.constant 0 : i32
    %c0_i32_0 = arith.constant 0 : i32
    %c0_i32_1 = arith.constant 0 : i32
    return %c0_i32, %c0_i32_0 : i32, i32
  }
  func.func @transform_6(%arg0: i32, %arg1: i32) -> (i32, i32) {
    %c0_i32 = arith.constant 0 : i32
    %c0_i32_0 = arith.constant 0 : i32
    %c0_i32_1 = arith.constant 0 : i32
    return %c0_i32, %c0_i32_0 : i32, i32
  }
  func.func @transform_7(%arg0: i32, %arg1: i32) -> (i32, i32) {
    %c0_i32 = arith.constant 0 : i32
    %c0_i32_0 = arith.constant 0 : i32
    %c0_i32_1 = arith.constant 0 : i32
    return %c0_i32, %c0_i32_0 : i32, i32
  }
  func.func @transform_8(%arg0: i32, %arg1: i32) -> (i32, i32, i32) {
    %c0_i32 = arith.constant 0 : i32
    %c0_i32_0 = arith.constant 0 : i32
    return %arg0, %arg1, %c0_i32 : i32, i32, i32
  }
  func.func @transform_9(%arg0: i32, %arg1: i32) -> (i32, i32) {
    %c0_i32 = arith.constant 0 : i32
    %c0_i32_0 = arith.constant 0 : i32
    %c0_i32_1 = arith.constant 0 : i32
    return %c0_i32, %c0_i32_0 : i32, i32
  }
}

module attributes {stable_mosaic.version = 11 : i64} {
  func.func @_bn_relu_conv_stats_kernel(%arg0: i32, %arg1: i32, %arg2: memref<1x16x128xf32, #tpu.memory_space<vmem>>, %arg3: memref<2x128xf32, #tpu.memory_space<vmem>>, %arg4: memref<1x128xf32, #tpu.memory_space<vmem>>, %arg5: memref<1x128xf32, #tpu.memory_space<vmem>>, %arg6: memref<128x128xbf16, #tpu.memory_space<vmem>>, %arg7: memref<1x128xf32, #tpu.memory_space<vmem>>, %arg8: memref<1x16x128xf32, #tpu.memory_space<vmem>>, %arg9: memref<2x128xf32, #tpu.memory_space<vmem>>) attributes {dimension_semantics = [#tpu.dimension_semantics<arbitrary>, #tpu.dimension_semantics<arbitrary>], iteration_bounds = array<i64: 2, 1>, scalar_prefetch = 0 : i64, scratch_operands = 0 : i64, tpu.core_type = #tpu.core_type<tc>, window_params = [{transform_indices = @transform_0, window_bounds = array<i64: 1, 16, 128>}, {pipeline_mode = #tpu.pipeline_mode<synchronous>, transform_indices = @transform_1, window_bounds = array<i64: 2, 128>}, {pipeline_mode = #tpu.pipeline_mode<synchronous>, transform_indices = @transform_2, window_bounds = array<i64: 1, 128>}, {pipeline_mode = #tpu.pipeline_mode<synchronous>, transform_indices = @transform_3, window_bounds = array<i64: 1, 128>}, {pipeline_mode = #tpu.pipeline_mode<synchronous>, transform_indices = @transform_4, window_bounds = array<i64: 128, 128>}, {pipeline_mode = #tpu.pipeline_mode<synchronous>, transform_indices = @transform_5, window_bounds = array<i64: 1, 128>}, {transform_indices = @transform_6, window_bounds = array<i64: 1, 16, 128>}, {pipeline_mode = #tpu.pipeline_mode<synchronous>, transform_indices = @transform_7, window_bounds = array<i64: 2, 128>}]} {
    %c0 = arith.constant 0 : index
    %c0_0 = arith.constant 0 : index
    %c0_1 = arith.constant 0 : index
    %0 = vector.load %arg2[%c0, %c0_0, %c0_1] : memref<1x16x128xf32, #tpu.memory_space<vmem>>, vector<1x16x128xf32>
    %1 = vector.shape_cast %0 : vector<1x16x128xf32> to vector<16x128xf32>
    %c0_2 = arith.constant 0 : index
    %c0_3 = arith.constant 0 : index
    %2 = vector.load %arg3[%c0_2, %c0_3] : memref<2x128xf32, #tpu.memory_space<vmem>>, vector<1x128xf32>
    %cst = arith.constant 3.125000e-02 : f32
    %3 = vector.broadcast %cst : f32 to vector<1x128xf32>
    %4 = arith.mulf %2, %3 : vector<1x128xf32>
    %c1 = arith.constant 1 : index
    %c0_4 = arith.constant 0 : index
    %5 = vector.load %arg3[%c1, %c0_4] : memref<2x128xf32, #tpu.memory_space<vmem>>, vector<1x128xf32>
    %cst_5 = arith.constant 3.125000e-02 : f32
    %6 = vector.broadcast %cst_5 : f32 to vector<1x128xf32>
    %7 = arith.mulf %5, %6 : vector<1x128xf32>
    %8 = arith.mulf %4, %4 : vector<1x128xf32>
    %9 = arith.subf %7, %8 : vector<1x128xf32>
    %cst_6 = arith.constant 0.000000e+00 : f32
    %10 = vector.broadcast %cst_6 : f32 to vector<1x128xf32>
    %11 = arith.maximumf %9, %10 : vector<1x128xf32>
    %c0_7 = arith.constant 0 : index
    %c0_8 = arith.constant 0 : index
    %12 = vector.load %arg4[%c0_7, %c0_8] : memref<1x128xf32, #tpu.memory_space<vmem>>, vector<1x128xf32>
    %cst_9 = arith.constant 9.99999974E-6 : f32
    %13 = vector.broadcast %cst_9 : f32 to vector<1x128xf32>
    %14 = arith.addf %11, %13 : vector<1x128xf32>
    %15 = math.rsqrt %14 : vector<1x128xf32>
    %16 = arith.mulf %12, %15 : vector<1x128xf32>
    %c0_10 = arith.constant 0 : index
    %c0_11 = arith.constant 0 : index
    %17 = vector.load %arg5[%c0_10, %c0_11] : memref<1x128xf32, #tpu.memory_space<vmem>>, vector<1x128xf32>
    %18 = arith.mulf %4, %16 : vector<1x128xf32>
    %19 = arith.subf %17, %18 : vector<1x128xf32>
    %20 = vector.broadcast %16 : vector<1x128xf32> to vector<16x128xf32>
    %21 = arith.mulf %1, %20 : vector<16x128xf32>
    %22 = vector.broadcast %19 : vector<1x128xf32> to vector<16x128xf32>
    %23 = arith.addf %21, %22 : vector<16x128xf32>
    %cst_12 = arith.constant 0.000000e+00 : f32
    %24 = vector.broadcast %cst_12 : f32 to vector<16x128xf32>
    %25 = arith.maximumf %23, %24 : vector<16x128xf32>
    %26 = arith.truncf %25 : vector<16x128xf32> to vector<16x128xbf16>
    %c0_13 = arith.constant 0 : index
    %c0_14 = arith.constant 0 : index
    %27 = vector.load %arg6[%c0_13, %c0_14] : memref<128x128xbf16, #tpu.memory_space<vmem>>, vector<128x128xbf16>
    %cst_15 = arith.constant dense<0.000000e+00> : vector<16x128xf32>
    %28 = tpu.matmul %26, %27, %cst_15 {dimension_numbers = #tpu.dot_dimension_numbers<[1], [0], [0], [1], [0, 0, 1, 1], [], []>} : vector<16x128xbf16>, vector<128x128xbf16>, vector<16x128xf32> -> vector<16x128xf32>
    %c0_16 = arith.constant 0 : index
    %c0_17 = arith.constant 0 : index
    %29 = vector.load %arg7[%c0_16, %c0_17] : memref<1x128xf32, #tpu.memory_space<vmem>>, vector<1x128xf32>
    %30 = vector.broadcast %29 : vector<1x128xf32> to vector<16x128xf32>
    %31 = arith.addf %28, %30 : vector<16x128xf32>
    %c0_18 = arith.constant 0 : index
    %c0_19 = arith.constant 0 : index
    %c0_20 = arith.constant 0 : index
    %32 = vector.load %arg8[%c0_18, %c0_19, %c0_20] : memref<1x16x128xf32, #tpu.memory_space<vmem>>, vector<1x16x128xf32>
    %33 = vector.shape_cast %32 : vector<1x16x128xf32> to vector<16x128xf32>
    %34 = vector.shape_cast %31 : vector<16x128xf32> to vector<1x16x128xf32>
    tpu.vector_store %arg8[%c0_18, %c0_19, %c0_20], %34 {strides = array<i32>} : memref<1x16x128xf32, #tpu.memory_space<vmem>>, vector<1x16x128xf32>,
    %c0_i32 = arith.constant 0 : i32
    %35 = arith.cmpi eq, %arg0, %c0_i32 : i32
    %c0_i32_21 = arith.constant 0 : i32
    %36 = arith.cmpi eq, %arg1, %c0_i32_21 : i32
    %37 = arith.andi %35, %36 : i1
    %38 = arith.extui %37 : i1 to i32
    %c0_i32_22 = arith.constant 0 : i32
    %39 = arith.cmpi ne, %38, %c0_i32_22 : i32
    scf.if %39 {
      %cst_33 = arith.constant 0.000000e+00 : f32
      %51 = vector.broadcast %cst_33 : f32 to vector<2x128xf32>
      %c0_34 = arith.constant 0 : index
      %c0_35 = arith.constant 0 : index
      %52 = vector.load %arg9[%c0_34, %c0_35] : memref<2x128xf32, #tpu.memory_space<vmem>>, vector<2x128xf32>
      tpu.vector_store %arg9[%c0_34, %c0_35], %51 {strides = array<i32>} : memref<2x128xf32, #tpu.memory_space<vmem>>, vector<2x128xf32>,
    } else {
    }
    %c0_23 = arith.constant 0 : index
    %c0_24 = arith.constant 0 : index
    %40 = vector.load %arg9[%c0_23, %c0_24] : memref<2x128xf32, #tpu.memory_space<vmem>>, vector<1x128xf32>
    %cst_25 = arith.constant dense<0.000000e+00> : vector<128xf32>
    %41 = vector.multi_reduction <add>, %31, %cst_25 [0] : vector<16x128xf32> to vector<128xf32>
    %42 = vector.shape_cast %41 : vector<128xf32> to vector<1x128xf32>
    %43 = arith.addf %40, %42 : vector<1x128xf32>
    %c0_26 = arith.constant 0 : index
    %c0_27 = arith.constant 0 : index
    %44 = vector.load %arg9[%c0_26, %c0_27] : memref<2x128xf32, #tpu.memory_space<vmem>>, vector<1x128xf32>
    tpu.vector_store %arg9[%c0_26, %c0_27], %43 {strides = array<i32>} : memref<2x128xf32, #tpu.memory_space<vmem>>, vector<1x128xf32>,
    %c1_28 = arith.constant 1 : index
    %c0_29 = arith.constant 0 : index
    %45 = vector.load %arg9[%c1_28, %c0_29] : memref<2x128xf32, #tpu.memory_space<vmem>>, vector<1x128xf32>
    %46 = arith.mulf %31, %31 : vector<16x128xf32>
    %cst_30 = arith.constant dense<0.000000e+00> : vector<128xf32>
    %47 = vector.multi_reduction <add>, %46, %cst_30 [0] : vector<16x128xf32> to vector<128xf32>
    %48 = vector.shape_cast %47 : vector<128xf32> to vector<1x128xf32>
    %49 = arith.addf %45, %48 : vector<1x128xf32>
    %c1_31 = arith.constant 1 : index
    %c0_32 = arith.constant 0 : index
    %50 = vector.load %arg9[%c1_31, %c0_32] : memref<2x128xf32, #tpu.memory_space<vmem>>, vector<1x128xf32>
    tpu.vector_store %arg9[%c1_31, %c0_32], %49 {strides = array<i32>} : memref<2x128xf32, #tpu.memory_space<vmem>>, vector<1x128xf32>,
    return
  }
  func.func @transform_0(%arg0: i32, %arg1: i32) -> (i32, i32, i32) {
    %c0_i32 = arith.constant 0 : i32
    %c0_i32_0 = arith.constant 0 : i32
    return %arg0, %arg1, %c0_i32 : i32, i32, i32
  }
  func.func @transform_1(%arg0: i32, %arg1: i32) -> (i32, i32) {
    %c0_i32 = arith.constant 0 : i32
    %c0_i32_0 = arith.constant 0 : i32
    %c0_i32_1 = arith.constant 0 : i32
    return %c0_i32, %c0_i32_0 : i32, i32
  }
  func.func @transform_2(%arg0: i32, %arg1: i32) -> (i32, i32) {
    %c0_i32 = arith.constant 0 : i32
    %c0_i32_0 = arith.constant 0 : i32
    %c0_i32_1 = arith.constant 0 : i32
    return %c0_i32, %c0_i32_0 : i32, i32
  }
  func.func @transform_3(%arg0: i32, %arg1: i32) -> (i32, i32) {
    %c0_i32 = arith.constant 0 : i32
    %c0_i32_0 = arith.constant 0 : i32
    %c0_i32_1 = arith.constant 0 : i32
    return %c0_i32, %c0_i32_0 : i32, i32
  }
  func.func @transform_4(%arg0: i32, %arg1: i32) -> (i32, i32) {
    %c0_i32 = arith.constant 0 : i32
    %c0_i32_0 = arith.constant 0 : i32
    %c0_i32_1 = arith.constant 0 : i32
    return %c0_i32, %c0_i32_0 : i32, i32
  }
  func.func @transform_5(%arg0: i32, %arg1: i32) -> (i32, i32) {
    %c0_i32 = arith.constant 0 : i32
    %c0_i32_0 = arith.constant 0 : i32
    %c0_i32_1 = arith.constant 0 : i32
    return %c0_i32, %c0_i32_0 : i32, i32
  }
  func.func @transform_6(%arg0: i32, %arg1: i32) -> (i32, i32, i32) {
    %c0_i32 = arith.constant 0 : i32
    %c0_i32_0 = arith.constant 0 : i32
    return %arg0, %arg1, %c0_i32 : i32, i32, i32
  }
  func.func @transform_7(%arg0: i32, %arg1: i32) -> (i32, i32) {
    %c0_i32 = arith.constant 0 : i32
    %c0_i32_0 = arith.constant 0 : i32
    %c0_i32_1 = arith.constant 0 : i32
    return %c0_i32, %c0_i32_0 : i32, i32
  }
}

module attributes {stable_mosaic.version = 11 : i64} {
  func.func @_bn_relu_max_mlp2mu_kernel(%arg0: i32, %arg1: i32, %arg2: memref<1x16x128xf32, #tpu.memory_space<vmem>>, %arg3: memref<2x128xf32, #tpu.memory_space<vmem>>, %arg4: memref<1x128xf32, #tpu.memory_space<vmem>>, %arg5: memref<1x128xf32, #tpu.memory_space<vmem>>, %arg6: memref<128x128xbf16, #tpu.memory_space<vmem>>, %arg7: memref<1x128xf32, #tpu.memory_space<vmem>>, %arg8: memref<1x1x128xf32, #tpu.memory_space<vmem>>, %arg9: memref<1x128xf32, #tpu.memory_space<vmem>>) attributes {dimension_semantics = [#tpu.dimension_semantics<parallel>, #tpu.dimension_semantics<arbitrary>], iteration_bounds = array<i64: 2, 1>, scalar_prefetch = 0 : i64, scratch_operands = 1 : i64, tpu.core_type = #tpu.core_type<tc>, window_params = [{transform_indices = @transform_0, window_bounds = array<i64: 1, 16, 128>}, {pipeline_mode = #tpu.pipeline_mode<synchronous>, transform_indices = @transform_1, window_bounds = array<i64: 2, 128>}, {pipeline_mode = #tpu.pipeline_mode<synchronous>, transform_indices = @transform_2, window_bounds = array<i64: 1, 128>}, {pipeline_mode = #tpu.pipeline_mode<synchronous>, transform_indices = @transform_3, window_bounds = array<i64: 1, 128>}, {pipeline_mode = #tpu.pipeline_mode<synchronous>, transform_indices = @transform_4, window_bounds = array<i64: 128, 128>}, {pipeline_mode = #tpu.pipeline_mode<synchronous>, transform_indices = @transform_5, window_bounds = array<i64: 1, 128>}, {transform_indices = @transform_6, window_bounds = array<i64: 1, 1, 128>}]} {
    %c0 = arith.constant 0 : index
    %c0_0 = arith.constant 0 : index
    %c0_1 = arith.constant 0 : index
    %0 = vector.load %arg2[%c0, %c0_0, %c0_1] : memref<1x16x128xf32, #tpu.memory_space<vmem>>, vector<1x16x128xf32>
    %1 = vector.shape_cast %0 : vector<1x16x128xf32> to vector<16x128xf32>
    %c0_2 = arith.constant 0 : index
    %c0_3 = arith.constant 0 : index
    %2 = vector.load %arg3[%c0_2, %c0_3] : memref<2x128xf32, #tpu.memory_space<vmem>>, vector<1x128xf32>
    %cst = arith.constant 3.125000e-02 : f32
    %3 = vector.broadcast %cst : f32 to vector<1x128xf32>
    %4 = arith.mulf %2, %3 : vector<1x128xf32>
    %c1 = arith.constant 1 : index
    %c0_4 = arith.constant 0 : index
    %5 = vector.load %arg3[%c1, %c0_4] : memref<2x128xf32, #tpu.memory_space<vmem>>, vector<1x128xf32>
    %cst_5 = arith.constant 3.125000e-02 : f32
    %6 = vector.broadcast %cst_5 : f32 to vector<1x128xf32>
    %7 = arith.mulf %5, %6 : vector<1x128xf32>
    %8 = arith.mulf %4, %4 : vector<1x128xf32>
    %9 = arith.subf %7, %8 : vector<1x128xf32>
    %cst_6 = arith.constant 0.000000e+00 : f32
    %10 = vector.broadcast %cst_6 : f32 to vector<1x128xf32>
    %11 = arith.maximumf %9, %10 : vector<1x128xf32>
    %c0_7 = arith.constant 0 : index
    %c0_8 = arith.constant 0 : index
    %12 = vector.load %arg4[%c0_7, %c0_8] : memref<1x128xf32, #tpu.memory_space<vmem>>, vector<1x128xf32>
    %cst_9 = arith.constant 9.99999974E-6 : f32
    %13 = vector.broadcast %cst_9 : f32 to vector<1x128xf32>
    %14 = arith.addf %11, %13 : vector<1x128xf32>
    %15 = math.rsqrt %14 : vector<1x128xf32>
    %16 = arith.mulf %12, %15 : vector<1x128xf32>
    %c0_10 = arith.constant 0 : index
    %c0_11 = arith.constant 0 : index
    %17 = vector.load %arg5[%c0_10, %c0_11] : memref<1x128xf32, #tpu.memory_space<vmem>>, vector<1x128xf32>
    %18 = arith.mulf %4, %16 : vector<1x128xf32>
    %19 = arith.subf %17, %18 : vector<1x128xf32>
    %20 = vector.broadcast %16 : vector<1x128xf32> to vector<16x128xf32>
    %21 = arith.mulf %1, %20 : vector<16x128xf32>
    %22 = vector.broadcast %19 : vector<1x128xf32> to vector<16x128xf32>
    %23 = arith.addf %21, %22 : vector<16x128xf32>
    %cst_12 = arith.constant 0.000000e+00 : f32
    %24 = vector.broadcast %cst_12 : f32 to vector<16x128xf32>
    %25 = arith.maximumf %23, %24 : vector<16x128xf32>
    %cst_13 = arith.constant dense<0xFF800000> : vector<128xf32>
    %26 = vector.multi_reduction <maximumf>, %25, %cst_13 [0] : vector<16x128xf32> to vector<128xf32>
    %27 = vector.shape_cast %26 : vector<128xf32> to vector<1x128xf32>
    %c0_i32 = arith.constant 0 : i32
    %28 = arith.cmpi eq, %arg1, %c0_i32 : i32
    %29 = arith.extui %28 : i1 to i32
    %c0_i32_14 = arith.constant 0 : i32
    %30 = arith.cmpi ne, %29, %c0_i32_14 : i32
    scf.if %30 {
      %c0_19 = arith.constant 0 : index
      %c0_20 = arith.constant 0 : index
      %37 = vector.load %arg9[%c0_19, %c0_20] : memref<1x128xf32, #tpu.memory_space<vmem>>, vector<1x128xf32>
      tpu.vector_store %arg9[%c0_19, %c0_20], %27 {strides = array<i32>} : memref<1x128xf32, #tpu.memory_space<vmem>>, vector<1x128xf32>,
    } else {
    }
    %c0_i32_15 = arith.constant 0 : i32
    %31 = arith.cmpi sgt, %arg1, %c0_i32_15 : i32
    %32 = arith.extui %31 : i1 to i32
    %c0_i32_16 = arith.constant 0 : i32
    %33 = arith.cmpi ne, %32, %c0_i32_16 : i32
    scf.if %33 {
      %c0_19 = arith.constant 0 : index
      %c0_20 = arith.constant 0 : index
      %37 = vector.load %arg9[%c0_19, %c0_20] : memref<1x128xf32, #tpu.memory_space<vmem>>, vector<1x128xf32>
      %38 = arith.maximumf %37, %27 : vector<1x128xf32>
      %c0_21 = arith.constant 0 : index
      %c0_22 = arith.constant 0 : index
      %39 = vector.load %arg9[%c0_21, %c0_22] : memref<1x128xf32, #tpu.memory_space<vmem>>, vector<1x128xf32>
      tpu.vector_store %arg9[%c0_21, %c0_22], %38 {strides = array<i32>} : memref<1x128xf32, #tpu.memory_space<vmem>>, vector<1x128xf32>,
    } else {
    }
    %c0_i32_17 = arith.constant 0 : i32
    %34 = arith.cmpi eq, %arg1, %c0_i32_17 : i32
    %35 = arith.extui %34 : i1 to i32
    %c0_i32_18 = arith.constant 0 : i32
    %36 = arith.cmpi ne, %35, %c0_i32_18 : i32
    scf.if %36 {
      %c0_19 = arith.constant 0 : index
      %c0_20 = arith.constant 0 : index
      %37 = vector.load %arg9[%c0_19, %c0_20] : memref<1x128xf32, #tpu.memory_space<vmem>>, vector<1x128xf32>
      %38 = arith.truncf %37 : vector<1x128xf32> to vector<1x128xbf16>
      %c0_21 = arith.constant 0 : index
      %c0_22 = arith.constant 0 : index
      %39 = vector.load %arg6[%c0_21, %c0_22] : memref<128x128xbf16, #tpu.memory_space<vmem>>, vector<128x128xbf16>
      %cst_23 = arith.constant dense<0.000000e+00> : vector<1x128xf32>
      %40 = tpu.matmul %38, %39, %cst_23 {dimension_numbers = #tpu.dot_dimension_numbers<[1], [0], [0], [1], [0, 0, 1, 1], [], []>} : vector<1x128xbf16>, vector<128x128xbf16>, vector<1x128xf32> -> vector<1x128xf32>
      %c0_24 = arith.constant 0 : index
      %c0_25 = arith.constant 0 : index
      %41 = vector.load %arg7[%c0_24, %c0_25] : memref<1x128xf32, #tpu.memory_space<vmem>>, vector<1x128xf32>
      %42 = arith.addf %40, %41 : vector<1x128xf32>
      %c0_26 = arith.constant 0 : index
      %c0_27 = arith.constant 0 : index
      %c0_28 = arith.constant 0 : index
      %43 = vector.load %arg8[%c0_26, %c0_27, %c0_28] : memref<1x1x128xf32, #tpu.memory_space<vmem>>, vector<1x1x128xf32>
      %44 = vector.shape_cast %43 : vector<1x1x128xf32> to vector<1x128xf32>
      %45 = vector.shape_cast %42 : vector<1x128xf32> to vector<1x1x128xf32>
      tpu.vector_store %arg8[%c0_26, %c0_27, %c0_28], %45 {strides = array<i32>} : memref<1x1x128xf32, #tpu.memory_space<vmem>>, vector<1x1x128xf32>,
    } else {
    }
    return
  }
  func.func @transform_0(%arg0: i32, %arg1: i32) -> (i32, i32, i32) {
    %c0_i32 = arith.constant 0 : i32
    %c0_i32_0 = arith.constant 0 : i32
    return %arg0, %arg1, %c0_i32 : i32, i32, i32
  }
  func.func @transform_1(%arg0: i32, %arg1: i32) -> (i32, i32) {
    %c0_i32 = arith.constant 0 : i32
    %c0_i32_0 = arith.constant 0 : i32
    %c0_i32_1 = arith.constant 0 : i32
    return %c0_i32, %c0_i32_0 : i32, i32
  }
  func.func @transform_2(%arg0: i32, %arg1: i32) -> (i32, i32) {
    %c0_i32 = arith.constant 0 : i32
    %c0_i32_0 = arith.constant 0 : i32
    %c0_i32_1 = arith.constant 0 : i32
    return %c0_i32, %c0_i32_0 : i32, i32
  }
  func.func @transform_3(%arg0: i32, %arg1: i32) -> (i32, i32) {
    %c0_i32 = arith.constant 0 : i32
    %c0_i32_0 = arith.constant 0 : i32
    %c0_i32_1 = arith.constant 0 : i32
    return %c0_i32, %c0_i32_0 : i32, i32
  }
  func.func @transform_4(%arg0: i32, %arg1: i32) -> (i32, i32) {
    %c0_i32 = arith.constant 0 : i32
    %c0_i32_0 = arith.constant 0 : i32
    %c0_i32_1 = arith.constant 0 : i32
    return %c0_i32, %c0_i32_0 : i32, i32
  }
  func.func @transform_5(%arg0: i32, %arg1: i32) -> (i32, i32) {
    %c0_i32 = arith.constant 0 : i32
    %c0_i32_0 = arith.constant 0 : i32
    %c0_i32_1 = arith.constant 0 : i32
    return %c0_i32, %c0_i32_0 : i32, i32
  }
  func.func @transform_6(%arg0: i32, %arg1: i32) -> (i32, i32, i32) {
    %c0_i32 = arith.constant 0 : i32
    %c0_i32_0 = arith.constant 0 : i32
    %c0_i32_1 = arith.constant 0 : i32
    return %arg0, %c0_i32, %c0_i32_0 : i32, i32, i32
  }
}

</mosaic_0001>

<llo_original>
// kernel: part_encoder_forward.6
$region0: #{part_encoder_forward.6}
  #allocation0 [shape = 'u32[]', space=smem, size = 0x4, offset = 0x4, fixed_abs, tag = 'smem constant byte address 0x4 - core index']
  #allocation1 [shape = 'u32[72,128]{1,0:T(1,128)}', space=vmem, size = 0x9000, scoped, tag = 'internal scratch']
  %s0 = inlined_call_operand.vmem [shape: f32[2,16,3], index: 0, kind: input, shape index: {}]
  %s1 = inlined_call_operand.vmem [shape: f32[3,64], index: 1, kind: input, shape index: {}]
  %s2 = inlined_call_operand.vmem [shape: f32[1,64], index: 2, kind: input, shape index: {}]
  %s3 = inlined_call_operand.vmem [shape: f32[2,64], index: 3, kind: input, shape index: {}]
  %s4 = inlined_call_operand.vmem [shape: f32[1,64], index: 4, kind: input, shape index: {}]
  %s5 = inlined_call_operand.vmem [shape: f32[1,64], index: 5, kind: input, shape index: {}]
  %s6 = inlined_call_operand.vmem [shape: bf16[64,128], index: 6, kind: input, shape index: {}]
  %s7 = inlined_call_operand.vmem [shape: f32[1,128], index: 7, kind: input, shape index: {}]
  %s8 = inlined_call_operand.vmem [shape: f32[2,16,128], index: 8, kind: output, shape index: {0}]
  %s9 = inlined_call_operand.vmem [shape: f32[2,128], index: 9, kind: output, shape index: {1}]
  %10 = xla_tuple %s8, %s9
  %s11 = sld [smem:[#allocation0]]
  $region77: #{part_encoder_forward.6} parent=0
    _
  %s13 = ssub.s32 1, %s11
  %s14 = scalar_select 0, %s13, %s11
  loop: start=0, step=1, limit=4
  $region2: #{part_encoder_forward.6} parent=0 // loop_pre_header
    _
  $region3: #{part_encoder_forward.6} parent=0 // loop_header
    %s16 = sphi 0, %s20
    %p17 = scmp.ge.s32.totalorder %s16, 4
    %s23 = sphi 0, %s35
    %s24 = sphi 0, %s31
    %s25 = sphi 0, %s23
    %s26 = sphi 0, %s24
    %s27 = sphi 0, %s25
    %s28 = sphi 0, %s26
    %s40 = sphi 0, %s42
    %s43 = sphi 0, %s40
    %s44 = sphi 0, %s43
    %s60 = sphi 0, %s44
    %s64 = sphi 0, %s64
    %s66 = sphi 0, %s64
    %s67 = sphi 0, %s66
    %s81 = sphi 0, %s67
    %s85 = sphi 0, %s85
    %s87 = sphi 0, %s85
    %s88 = sphi 0, %s87
    %s102 = sphi 0, %s88
    %s106 = sphi 0, %s106
    %s108 = sphi 0, %s106
    %s109 = sphi 0, %s108
    %s123 = sphi 0, %s109
    %s127 = sphi 0, %s127
    %s129 = sphi 0, %s127
    %s130 = sphi 0, %s129
    %s144 = sphi 0, %s130
    %s148 = sphi 0, %s148
    %s150 = sphi 0, %s148
    %s151 = sphi 0, %s150
    %s165 = sphi 0, %s151
    %s169 = sphi 0, %s169
    %s171 = sphi 0, %s169
    %s172 = sphi 0, %s171
    %s186 = sphi 0, %s172
    %s190 = sphi 0, %s190
    %s192 = sphi 0, %s190
    %s193 = sphi 0, %s192
    %s207 = sphi 0, %s193
    %s215 = sphi 0, %s217
    %s218 = sphi 0, %s215
    %s219 = sphi 0, %s218
    %s235 = sphi 0, %s219
    %s239 = sphi 0, %s239
    %s241 = sphi 0, %s239
    %s242 = sphi 0, %s241
    %s256 = sphi 0, %s242
  $region4: #{part_encoder_forward.6} parent=0 // loop_header_branch
    %19 = sbr.rel (%p17) target = $region8
  $region5: #{part_encoder_forward.6} parent=0 // loop_body
    %s21 = ssub.s32 %s16, 1
    %s22 = ssub.s32 %s16, 2
    %s29 = sadd.s32 1, %s24
    %p30 = scmp.ge.s32.totalorder %s29, 1
    %s31 = scalar_select %p30, 0, %s29
    %s32 = sadd.s32 1, %s23
    %s33 = scalar_select %p30, %s32, %s23
    %p34 = scmp.ge.s32.totalorder %s33, 2
    %s35 = scalar_select %p34, 0, %s33
    %s36 = ssub.s32 %s23, %s35
    %s37 = ssub.s32 %s24, %s31
    %s38 = sor.u32 %s36, %s37
    %p39 = scmp.eq.s32.totalorder %s38, 0
    %s41 = sadd.s32 %s40, 1
    %s42 = scalar_select %p39, %s40, %s41
    %p45 = pneg %p39
    %p46 = scmp.eq.s32.totalorder %s16, 1
    %p47 = por %p45, %p46
    %p48 = scmp.ne.s32.totalorder %s40, %s43
    %p49 = scmp.eq.s32.totalorder %s16, 0
    %p50 = por %p48, %p49
    %p51 = scmp.ne.s32.totalorder %s40, %s43
    %p52 = scmp.eq.s32.totalorder %s21, 1
    %p53 = por %p51, %p52
    %p54 = scmp.ne.s32.totalorder %s43, %s44
    %p55 = scmp.eq.s32.totalorder %s21, 0
    %p56 = por %p54, %p55
    %p57 = scmp.ne.s32.totalorder %s43, %s44
    %p58 = scmp.eq.s32.totalorder %s22, 1
    %p59 = por %p57, %p58
    %p61 = scmp.ne.s32.totalorder %s44, %s60
    %p62 = scmp.eq.s32.totalorder %s22, 0
    %p63 = por %p61, %p62
    %s65 = sadd.s32 %s64, 1
    %p68 = scmp.eq.s32.totalorder %s16, 1
    %p69 = scmp.ne.s32.totalorder %s64, %s66
    %p70 = scmp.eq.s32.totalorder %s16, 0
    %p71 = por %p69, %p70
    %p72 = scmp.ne.s32.totalorder %s64, %s66
    %p73 = scmp.eq.s32.totalorder %s21, 1
    %p74 = por %p72, %p73
    %p75 = scmp.ne.s32.totalorder %s66, %s67
    %p76 = scmp.eq.s32.totalorder %s21, 0
    %p77 = por %p75, %p76
    %p78 = scmp.ne.s32.totalorder %s66, %s67
    %p79 = scmp.eq.s32.totalorder %s22, 1
    %p80 = por %p78, %p79
    %p82 = scmp.ne.s32.totalorder %s67, %s81
    %p83 = scmp.eq.s32.totalorder %s22, 0
    %p84 = por %p82, %p83
    %s86 = sadd.s32 %s85, 1
    %p89 = scmp.eq.s32.totalorder %s16, 1
    %p90 = scmp.ne.s32.totalorder %s85, %s87
    %p91 = scmp.eq.s32.totalorder %s16, 0
    %p92 = por %p90, %p91
    %p93 = scmp.ne.s32.totalorder %s85, %s87
    %p94 = scmp.eq.s32.totalorder %s21, 1
    %p95 = por %p93, %p94
    %p96 = scmp.ne.s32.totalorder %s87, %s88
    %p97 = scmp.eq.s32.totalorder %s21, 0
    %p98 = por %p96, %p97
    %p99 = scmp.ne.s32.totalorder %s87, %s88
    %p100 = scmp.eq.s32.totalorder %s22, 1
    %p101 = por %p99, %p100
    %p103 = scmp.ne.s32.totalorder %s88, %s102
    %p104 = scmp.eq.s32.totalorder %s22, 0
    %p105 = por %p103, %p104
    %s107 = sadd.s32 %s106, 1
    %p110 = scmp.eq.s32.totalorder %s16, 1
    %p111 = scmp.ne.s32.totalorder %s106, %s108
    %p112 = scmp.eq.s32.totalorder %s16, 0
    %p113 = por %p111, %p112
    %p114 = scmp.ne.s32.totalorder %s106, %s108
    %p115 = scmp.eq.s32.totalorder %s21, 1
    %p116 = por %p114, %p115
    %p117 = scmp.ne.s32.totalorder %s108, %s109
    %p118 = scmp.eq.s32.totalorder %s21, 0
    %p119 = por %p117, %p118
    %p120 = scmp.ne.s32.totalorder %s108, %s109
    %p121 = scmp.eq.s32.totalorder %s22, 1
    %p122 = por %p120, %p121
    %p124 = scmp.ne.s32.totalorder %s109, %s123
    %p125 = scmp.eq.s32.totalorder %s22, 0
    %p126 = por %p124, %p125
    %s128 = sadd.s32 %s127, 1
    %p131 = scmp.eq.s32.totalorder %s16, 1
    %p132 = scmp.ne.s32.totalorder %s127, %s129
    %p133 = scmp.eq.s32.totalorder %s16, 0
    %p134 = por %p132, %p133
    %p135 = scmp.ne.s32.totalorder %s127, %s129
    %p136 = scmp.eq.s32.totalorder %s21, 1
    %p137 = por %p135, %p136
    %p138 = scmp.ne.s32.totalorder %s129, %s130
    %p139 = scmp.eq.s32.totalorder %s21, 0
    %p140 = por %p138, %p139
    %p141 = scmp.ne.s32.totalorder %s129, %s130
    %p142 = scmp.eq.s32.totalorder %s22, 1
    %p143 = por %p141, %p142
    %p145 = scmp.ne.s32.totalorder %s130, %s144
    %p146 = scmp.eq.s32.totalorder %s22, 0
    %p147 = por %p145, %p146
    %s149 = sadd.s32 %s148, 1
    %p152 = scmp.eq.s32.totalorder %s16, 1
    %p153 = scmp.ne.s32.totalorder %s148, %s150
    %p154 = scmp.eq.s32.totalorder %s16, 0
    %p155 = por %p153, %p154
    %p156 = scmp.ne.s32.totalorder %s148, %s150
    %p157 = scmp.eq.s32.totalorder %s21, 1
    %p158 = por %p156, %p157
    %p159 = scmp.ne.s32.totalorder %s150, %s151
    %p160 = scmp.eq.s32.totalorder %s21, 0
    %p161 = por %p159, %p160
    %p162 = scmp.ne.s32.totalorder %s150, %s151
    %p163 = scmp.eq.s32.totalorder %s22, 1
    %p164 = por %p162, %p163
    %p166 = scmp.ne.s32.totalorder %s151, %s165
    %p167 = scmp.eq.s32.totalorder %s22, 0
    %p168 = por %p166, %p167
    %s170 = sadd.s32 %s169, 1
    %p173 = scmp.eq.s32.totalorder %s16, 1
    %p174 = scmp.ne.s32.totalorder %s169, %s171
    %p175 = scmp.eq.s32.totalorder %s16, 0
    %p176 = por %p174, %p175
    %p177 = scmp.ne.s32.totalorder %s169, %s171
    %p178 = scmp.eq.s32.totalorder %s21, 1
    %p179 = por %p177, %p178
    %p180 = scmp.ne.s32.totalorder %s171, %s172
    %p181 = scmp.eq.s32.totalorder %s21, 0
    %p182 = por %p180, %p181
    %p183 = scmp.ne.s32.totalorder %s171, %s172
    %p184 = scmp.eq.s32.totalorder %s22, 1
    %p185 = por %p183, %p184
    %p187 = scmp.ne.s32.totalorder %s172, %s186
    %p188 = scmp.eq.s32.totalorder %s22, 0
    %p189 = por %p187, %p188
    %s191 = sadd.s32 %s190, 1
    %p194 = scmp.eq.s32.totalorder %s16, 1
    %p195 = scmp.ne.s32.totalorder %s190, %s192
    %p196 = scmp.eq.s32.totalorder %s16, 0
    %p197 = por %p195, %p196
    %p198 = scmp.ne.s32.totalorder %s190, %s192
    %p199 = scmp.eq.s32.totalorder %s21, 1
    %p200 = por %p198, %p199
    %p201 = scmp.ne.s32.totalorder %s192, %s193
    %p202 = scmp.eq.s32.totalorder %s21, 0
    %p203 = por %p201, %p202
    %p204 = scmp.ne.s32.totalorder %s192, %s193
    %p205 = scmp.eq.s32.totalorder %s22, 1
    %p206 = por %p204, %p205
    %p208 = scmp.ne.s32.totalorder %s193, %s207
    %p209 = scmp.eq.s32.totalorder %s22, 0
    %p210 = por %p208, %p209
    %s211 = ssub.s32 %s23, %s35
    %s212 = ssub.s32 %s24, %s31
    %s213 = sor.u32 %s211, %s212
    %p214 = scmp.eq.s32.totalorder %s213, 0
    %s216 = sadd.s32 %s215, 1
    %s217 = scalar_select %p214, %s215, %s216
    %p220 = pneg %p214
    %p221 = scmp.eq.s32.totalorder %s16, 1
    %p222 = por %p220, %p221
    %p223 = scmp.ne.s32.totalorder %s215, %s218
    %p224 = scmp.eq.s32.totalorder %s16, 0
    %p225 = por %p223, %p224
    %p226 = scmp.ne.s32.totalorder %s215, %s218
    %p227 = scmp.eq.s32.totalorder %s21, 1
    %p228 = por %p226, %p227
    %p229 = scmp.ne.s32.totalorder %s218, %s219
    %p230 = scmp.eq.s32.totalorder %s21, 0
    %p231 = por %p229, %p230
    %p232 = scmp.ne.s32.totalorder %s218, %s219
    %p233 = scmp.eq.s32.totalorder %s22, 1
    %p234 = por %p232, %p233
    %p236 = scmp.ne.s32.totalorder %s219, %s235
    %p237 = scmp.eq.s32.totalorder %s22, 0
    %p238 = por %p236, %p237
    %s240 = sadd.s32 %s239, 1
    %p243 = scmp.eq.s32.totalorder %s16, 1
    %p244 = scmp.ne.s32.totalorder %s239, %s241
    %p245 = scmp.eq.s32.totalorder %s16, 0
    %p246 = por %p244, %p245
    %p247 = scmp.ne.s32.totalorder %s239, %s241
    %p248 = scmp.eq.s32.totalorder %s21, 1
    %p249 = por %p247, %p248
    %p250 = scmp.ne.s32.totalorder %s241, %s242
    %p251 = scmp.eq.s32.totalorder %s21, 0
    %p252 = por %p250, %p251
    %p253 = scmp.ne.s32.totalorder %s241, %s242
    %p254 = scmp.eq.s32.totalorder %s22, 1
    %p255 = por %p253, %p254
    %p257 = scmp.ne.s32.totalorder %s242, %s256
    %p258 = scmp.eq.s32.totalorder %s22, 0
    %p259 = por %p257, %p258
    %p260 = scmp.le.s32.totalorder 1, %s16
    %p261 = scmp.lt.s32.totalorder %s16, 3
    %p262 = pnand %p260, %p261
    %p263 = pneg %p262
    // Predicated region
    $region9: #{part_encoder_forward.6} parent=5 // pred_check
      _
    $region10: #{part_encoder_forward.6} parent=5 // pred_check_branch
      %265 = sbr.rel (%p262) target = $region12
    $region11: #{part_encoder_forward.6} parent=5 // pred_region
      %s266 = ssub.s32 %s16, 1
      // Predicated region
      $region13: #{part_encoder_forward.6} parent=11 // pred_check
        %p267 = pneg %p77
      $region14: #{part_encoder_forward.6} parent=11 // pred_check_branch
        %269 = sbr.rel (%p267) target = $region16
      $region15: #{part_encoder_forward.6} parent=11 // pred_region
        _
      $region16: #{part_encoder_forward.6} parent=11 // pred_fallthru
        _
      // Predicated region
      $region17: #{part_encoder_forward.6} parent=11 // pred_check
        %p270 = pneg %p98
      $region18: #{part_encoder_forward.6} parent=11 // pred_check_branch
        %272 = sbr.rel (%p270) target = $region20
      $region19: #{part_encoder_forward.6} parent=11 // pred_region
        _
      $region20: #{part_encoder_forward.6} parent=11 // pred_fallthru
        _
      // Predicated region
      $region21: #{part_encoder_forward.6} parent=11 // pred_check
        %p273 = pneg %p119
      $region22: #{part_encoder_forward.6} parent=11 // pred_check_branch
        %275 = sbr.rel (%p273) target = $region24
      $region23: #{part_encoder_forward.6} parent=11 // pred_region
        _
      $region24: #{part_encoder_forward.6} parent=11 // pred_fallthru
        _
      // Predicated region
      $region25: #{part_encoder_forward.6} parent=11 // pred_check
        %p276 = pneg %p140
      $region26: #{part_encoder_forward.6} parent=11 // pred_check_branch
        %278 = sbr.rel (%p276) target = $region28
      $region27: #{part_encoder_forward.6} parent=11 // pred_region
        _
      $region28: #{part_encoder_forward.6} parent=11 // pred_fallthru
        _
      // Predicated region
      $region29: #{part_encoder_forward.6} parent=11 // pred_check
        %p279 = pneg %p161
      $region30: #{part_encoder_forward.6} parent=11 // pred_check_branch
        %281 = sbr.rel (%p279) target = $region32
      $region31: #{part_encoder_forward.6} parent=11 // pred_region
        _
      $region32: #{part_encoder_forward.6} parent=11 // pred_fallthru
        _
      // Predicated region
      $region33: #{part_encoder_forward.6} parent=11 // pred_check
        %p282 = pneg %p182
      $region34: #{part_encoder_forward.6} parent=11 // pred_check_branch
        %284 = sbr.rel (%p282) target = $region36
      $region35: #{part_encoder_forward.6} parent=11 // pred_region
        _
      $region36: #{part_encoder_forward.6} parent=11 // pred_fallthru
        _
      // Predicated region
      $region37: #{part_encoder_forward.6} parent=11 // pred_check
        %p285 = pneg %p203
      $region38: #{part_encoder_forward.6} parent=11 // pred_check_branch
        %287 = sbr.rel (%p285) target = $region40
      $region39: #{part_encoder_forward.6} parent=11 // pred_region
        _
      $region40: #{part_encoder_forward.6} parent=11 // pred_fallthru
        _
    $region12: #{part_encoder_forward.6} parent=5 // pred_fallthru
      _
    %p288 = scmp.lt.s32.totalorder %s16, 2
    // Predicated region
    $region41: #{part_encoder_forward.6} parent=5 // pred_check
      %p289 = pneg %p288
    $region42: #{part_encoder_forward.6} parent=5 // pred_check_branch
      %291 = sbr.rel (%p289) target = $region44
    $region43: #{part_encoder_forward.6} parent=5 // pred_region
      // Predicated region
      $region45: #{part_encoder_forward.6} parent=43 // pred_check
        %p292 = pneg %p50
      $region46: #{part_encoder_forward.6} parent=43 // pred_check_branch
        %294 = sbr.rel (%p292) target = $region48
      $region47: #{part_encoder_forward.6} parent=43 // pred_region
        %s295 = smul.u32 2, %s24
        %p296 = scmp.lt.s32.totalorder %s23, 1
        %s297 = scalar_select %p296, %s23, 1
        %p298 = scmp.lt.s32.totalorder %s295, 1
        %s299 = scalar_select %p298, %s295, 1
        %s300 = smul.addr %s297, 2
        %s301 = sadd.s32 %s299, %s300
        %s302 = smul.addr %s301, 8
        %s303 = scalar_lea.vmem %s0, %s302
        %s304 = smul.u32 2, %s24
      $region48: #{part_encoder_forward.6} parent=43 // pred_fallthru
        _
    $region44: #{part_encoder_forward.6} parent=5 // pred_fallthru
      _
    %p305 = scmp.le.s32.totalorder 1, %s16
    %p306 = scmp.lt.s32.totalorder %s16, 3
    %p307 = pnand %p305, %p306
    %p308 = pneg %p307
    // Predicated region
    $region49: #{part_encoder_forward.6} parent=5 // pred_check
      _
    $region50: #{part_encoder_forward.6} parent=5 // pred_check_branch
      %310 = sbr.rel (%p307) target = $region52
    $region51: #{part_encoder_forward.6} parent=5 // pred_region
      %s311 = ssub.s32 %s16, 1
      %s312 = smul.u32 2, %s26
      %p313 = scmp.lt.s32.totalorder %s25, 1
      %s314 = scalar_select %p313, %s25, 1
      %p315 = scmp.lt.s32.totalorder %s312, 1
      %s316 = scalar_select %p315, %s312, 1
      %s317 = smul.addr %s314, 2
      %s318 = sadd.s32 %s316, %s317
      %s319 = smul.addr %s318, 8
      %s320 = scalar_lea.vmem %s0, %s319
      %p321 = pneg %p56
      %p322 = pneg %p53
      %p323 = pneg %p77
      %p324 = pneg %p74
      %p325 = pneg %p98
      %p326 = pneg %p95
      %p327 = pneg %p119
      %p328 = pneg %p116
      %p329 = pneg %p140
      %p330 = pneg %p137
      %p331 = pneg %p161
      %p332 = pneg %p158
      %p333 = pneg %p182
      %p334 = pneg %p179
      %p335 = pneg %p203
      %p336 = pneg %p200
      %p337 = pneg %p231
      %p338 = pneg %p228
      %s339 = smul.u32 2, %s26
      %p340 = scmp.lt.s32.totalorder %s25, 1
      %s341 = scalar_select %p340, %s25, 1
      %p342 = scmp.lt.s32.totalorder %s339, 1
      %s343 = scalar_select %p342, %s339, 1
      %s344 = smul.addr %s341, 2
      %s345 = sadd.s32 %s343, %s344
      %s346 = smul.addr %s345, 8
      %s347 = scalar_lea.vmem %s8, %s346
      %p348 = pneg %p252
      %p349 = pneg %p249
      %s350 = smul.u32 2, %s26
      %p351 = scmp.lt.s32.totalorder %s25, 1
      %s352 = scalar_select %p351, %s25, 1
      %p353 = scmp.lt.s32.totalorder %s350, 1
      %s354 = scalar_select %p353, %s350, 1
      %s355 = smul.addr %s352, 2
      %s356 = sadd.s32 %s354, %s355
      %s357 = smul.addr %s356, 8
      %s358 = scalar_lea.vmem %s0, %s357
      %s359 = smul.u32 2, %s26
      %s360 = smul.u32 2, %s26
      %p361 = scmp.lt.s32.totalorder %s25, 1
      %s362 = scalar_select %p361, %s25, 1
      %p363 = scmp.lt.s32.totalorder %s360, 1
      %s364 = scalar_select %p363, %s360, 1
      %s365 = smul.addr %s362, 2
      %s366 = sadd.s32 %s364, %s365
      %s367 = smul.addr %s366, 8
      %s368 = scalar_lea.vmem %s8, %s367
      %s369 = smul.u32 2, %s26
      %v371 = vld [vmem:[%s358] sm:$0xff]
      %v372 = vld [vmem:[%s358 + $0x8] sm:$0xff]
      %v373 = vld [vmem:[%s1] sm:$0x7]
      %375 = vset.pattern.permute.xlu0 0
      %376 = vperm.xlu0 %375, %v371
      %v377 = vpop.permute.xlu0 %376
      %380 = vset.pattern.permute.xlu0 0
      %381 = vperm.xlu0 %380, %v372
      %v382 = vpop.permute.xlu0 %381
      %v384 = vperm.slane %v373, 0
      %v385 = vmul.f32 %v377, %v384
      %v386 = vmul.f32 %v382, %v384
      %387 = vset.pattern.permute.xlu0 1
      %388 = vperm.xlu0 %387, %v371
      %v389 = vpop.permute.xlu0 %388
      %391 = vset.pattern.permute.xlu0 1
      %392 = vperm.xlu0 %391, %v372
      %v393 = vpop.permute.xlu0 %392
      %v395 = vperm.slane %v373, 1
      %v396 = vmul.f32 %v389, %v395
      %v397 = vmul.f32 %v393, %v395
      %v398 = vadd.f32 %v385, %v396
      %v399 = vadd.f32 %v386, %v397
      %400 = vset.pattern.permute.xlu0 2
      %401 = vperm.xlu0 %400, %v371
      %v402 = vpop.permute.xlu0 %401
      %404 = vset.pattern.permute.xlu0 2
      %405 = vperm.xlu0 %404, %v372
      %v406 = vpop.permute.xlu0 %405
      %v408 = vperm.slane %v373, 2
      %v409 = vmul.f32 %v402, %v408
      %v410 = vmul.f32 %v406, %v408
      %v411 = vadd.f32 %v398, %v409
      %v412 = vadd.f32 %v399, %v410
      %v413 = vld [vmem:[%s2] sm:$0x1]
      %v415 = vperm.slane %v413, 0
      %v417 = vadd.f32 %v411, %v415
      %v418 = vadd.f32 %v412, %v415
      %v419 = vld [vmem:[%s3] sm:$0x1]
      %v420 = vmul.f32 %v419, 0.03125
      %v421 = vld [vmem:[%s3 + $0x1] sm:$0x1]
      %v422 = vmul.f32 %v421, 0.03125
      %v423 = vmul.f32 %v420, %v420
      %v424 = vsub.f32 %v422, %v423
      %v425 = vmax.f32 %v424, 0.0
      %v426 = vld [vmem:[%s4] sm:$0x1]
      %v427 = vadd.f32 %v425, 1e-05
      %v428 = vrsqrt.pop %v427
      %v429 = vmul.f32 %v428, %v427
      %v430 = vmul.f32 %v429, %v428
      %v431 = vmul.f32 0.5, %v430
      %v432 = vsub.f32 1.5, %v431
      %v433 = vmul.f32 %v428, %v432
      %vm434 = vweird.f32 %v427
      %vm435 = vweird.f32 %v428
      %vm436 = vmor %vm434, %vm435
      %v437 = vsel %vm436, %v428, %v433
      %v438 = vmul.f32 %v426, %v437
      %v439 = vld [vmem:[%s5] sm:$0x1]
      %v440 = vmul.f32 %v420, %v438
      %v441 = vsub.f32 %v439, %v440
      %v443 = vperm.slane %v438, 0
      %v445 = vmul.f32 %v417, %v443
      %v446 = vmul.f32 %v418, %v443
      %v448 = vperm.slane %v441, 0
      %v450 = vadd.f32 %v445, %v448
      %v451 = vadd.f32 %v446, %v448
      %v452 = vmax.f32 %v450, 0.0
      %v453 = vmax.f32 %v451, 0.0
      %v454 = vpack.c.bf16 %v453, %v452
      %v455 = vld [vmem:[%s6] sm:$0xf]
      %v456 = vld [vmem:[%s6 + $0x4] sm:$0xf]
      %v457 = vld [vmem:[%s6 + $0x8] sm:$0xf]
      %v458 = vld [vmem:[%s6 + $0xc] sm:$0xf]
      %v459 = vld [vmem:[%s6 + $0x10] sm:$0xf]
      %v460 = vld [vmem:[%s6 + $0x14] sm:$0xf]
      %v461 = vld [vmem:[%s6 + $0x18] sm:$0xf]
      %v462 = vld [vmem:[%s6 + $0x1c] sm:$0xf]
      %v463 = vld [vmem:[%s7] sm:$0x1]
      %v465 = vperm.slane %v463, 0
      %v475 = vunpack.c.l.b16 %v455
      %v476 = vunpack.c.l.b16 %v456
      %v477 = vunpack.c.l.b16 %v457
      %v478 = vunpack.c.l.b16 %v458
      %v479 = vunpack.c.l.b16 %v459
      %v480 = vunpack.c.l.b16 %v460
      %v481 = vunpack.c.l.b16 %v461
      %v482 = vunpack.c.l.b16 %v462
      %v483 = vpack.c.b16 %v476, %v475
      %v484 = vpack.c.b16 %v478, %v477
      %v485 = vpack.c.b16 %v480, %v479
      %v486 = vpack.c.b16 %v482, %v481
      %vm491 = vcmask 523264
      %v493 = vsel %vm491, %v454, 0
      %495 = vmatpush.bf16.msra.mxu0 0
      %496 = vmatpush.bf16.msra.mxu0 0
      %497 = vmatpush.bf16.msra.mxu0 0
      %498 = vmatpush.bf16.msra.mxu0 0
      %499 = vmatpush.bf16.msra.mxu0 %v486
      %500 = vmatpush.bf16.msra.mxu0 %v485
      %501 = vmatpush.bf16.msra.mxu0 %v484
      %502 = vmatpush.bf16.msra.mxu0 %v483
      %503 = vmatmul.bf16.gmra.mxu0 %v493
      %v504 = vpop.f32.mrf.mxu0
      %v505 = vadd.f32 %v465, %v504
      %v506 = vpop.f32.mrf.mxu0
      %v507 = vadd.f32 %v465, %v506
      %508 = vdwg.mxu0
      %509 = vst [vmem:[%s368] sm:$0xff] %v505
      %510 = vst [vmem:[%s368 + $0x8] sm:$0xff] %v507
      %p511 = scmp.eq.s32.totalorder %s25, 0
      %p512 = scmp.eq.s32.totalorder %s26, 0
      %p513 = pnand %p511, %p512
      %p514 = pneg %p513
      // Predicated region
      $region53: #{part_encoder_forward.6} parent=51 // pred_check
        _
      $region54: #{part_encoder_forward.6} parent=51 // pred_check_branch
        %516 = sbr.rel (%p513) target = $region56
      $region55: #{part_encoder_forward.6} parent=51 // pred_region
        %517 = vst [vmem:[%s9] sm:$0x3] 0.0
      $region56: #{part_encoder_forward.6} parent=51 // pred_fallthru
        _
      %v518 = vld [vmem:[%s9] sm:$0x1]
      %v519 = vadd.f32 %v505, %v507
      %v520 = vrot.slane %v519, 4
      %v521 = vadd.f32 %v519, %v520
      %v522 = vrot.slane %v521, 2
      %v523 = vadd.f32 %v521, %v522
      %v524 = vrot.slane %v523, 1
      %v525 = vadd.f32 %v523, %v524
      %v526 = vadd.f32 %v518, %v525
      %527 = vst [vmem:[%s9] sm:$0x1] %v526
      %v528 = vld [vmem:[%s9 + $0x1] sm:$0x1]
      %v529 = vmul.f32 %v505, %v505
      %v530 = vmul.f32 %v507, %v507
      %v531 = vadd.f32 %v529, %v530
      %v532 = vrot.slane %v531, 4
      %v533 = vadd.f32 %v531, %v532
      %v534 = vrot.slane %v533, 2
      %v535 = vadd.f32 %v533, %v534
      %v536 = vrot.slane %v535, 1
      %v537 = vadd.f32 %v535, %v536
      %v538 = vadd.f32 %v528, %v537
      %539 = vst [vmem:[%s9 + $0x1] sm:$0x1] %v538
      %s540 = smul.u32 2, %s26
      %p541 = scmp.lt.s32.totalorder %s25, 1
      %s542 = scalar_select %p541, %s25, 1
      %p543 = scmp.lt.s32.totalorder %s540, 1
      %s544 = scalar_select %p543, %s540, 1
      %s545 = smul.addr %s542, 2
      %s546 = sadd.s32 %s544, %s545
      %s547 = smul.addr %s546, 8
      %s548 = scalar_lea.vmem %s8, %s547
      // Predicated region
      $region57: #{part_encoder_forward.6} parent=51 // pred_check
        %p549 = pneg %p228
      $region58: #{part_encoder_forward.6} parent=51 // pred_check_branch
        %551 = sbr.rel (%p549) target = $region60
      $region59: #{part_encoder_forward.6} parent=51 // pred_region
        %s552 = smul.u32 2, %s26
      $region60: #{part_encoder_forward.6} parent=51 // pred_fallthru
        _
      // Predicated region
      $region61: #{part_encoder_forward.6} parent=51 // pred_check
        %p553 = pneg %p249
      $region62: #{part_encoder_forward.6} parent=51 // pred_check_branch
        %555 = sbr.rel (%p553) target = $region64
      $region63: #{part_encoder_forward.6} parent=51 // pred_region
        _
      $region64: #{part_encoder_forward.6} parent=51 // pred_fallthru
        _
      // Predicated region
      $region65: #{part_encoder_forward.6} parent=51 // pred_check
        %p556 = pneg %p249
      $region66: #{part_encoder_forward.6} parent=51 // pred_check_branch
        %558 = sbr.rel (%p556) target = $region68
      $region67: #{part_encoder_forward.6} parent=51 // pred_region
        _
      $region68: #{part_encoder_forward.6} parent=51 // pred_fallthru
        _
    $region52: #{part_encoder_forward.6} parent=5 // pred_fallthru
      _
    %p559 = scmp.le.s32.totalorder 2, %s16
    // Predicated region
    $region69: #{part_encoder_forward.6} parent=5 // pred_check
      %p560 = pneg %p559
    $region70: #{part_encoder_forward.6} parent=5 // pred_check_branch
      %562 = sbr.rel (%p560) target = $region72
    $region71: #{part_encoder_forward.6} parent=5 // pred_region
      %s563 = ssub.s32 %s16, 2
      // Predicated region
      $region73: #{part_encoder_forward.6} parent=71 // pred_check
        %p564 = pneg %p234
      $region74: #{part_encoder_forward.6} parent=71 // pred_check_branch
        %566 = sbr.rel (%p564) target = $region76
      $region75: #{part_encoder_forward.6} parent=71 // pred_region
        %s567 = smul.u32 2, %s28
        %p568 = scmp.lt.s32.totalorder %s27, 1
        %s569 = scalar_select %p568, %s27, 1
        %p570 = scmp.lt.s32.totalorder %s567, 1
        %s571 = scalar_select %p570, %s567, 1
        %s572 = smul.addr %s569, 2
        %s573 = sadd.s32 %s571, %s572
        %s574 = smul.addr %s573, 8
        %s575 = scalar_lea.vmem %s8, %s574
      $region76: #{part_encoder_forward.6} parent=71 // pred_fallthru
        _
    $region72: #{part_encoder_forward.6} parent=5 // pred_fallthru
      _
  $region6: #{part_encoder_forward.6} parent=0 // loop_footer
    %s20 = sadd.s32 1, %s16
  $region7: #{part_encoder_forward.6} parent=0 // loop_footer_branch
    %15 = sbr.rel target = $region3
  $region8: #{part_encoder_forward.6} parent=0 // loop_exit
    _

// kernel: part_encoder_forward.5
$region0: #{part_encoder_forward.5}
  #allocation0 [shape = 'u32[]', space=smem, size = 0x4, offset = 0x4, fixed_abs, tag = 'smem constant byte address 0x4 - core index']
  #allocation1 [shape = 'u32[72,128]{1,0:T(1,128)}', space=vmem, size = 0x9000, scoped, tag = 'internal scratch']
  %s0 = inlined_call_operand.vmem [shape: f32[2,16,3], index: 0, kind: input, shape index: {}]
  %s1 = inlined_call_operand.vmem [shape: f32[3,64], index: 1, kind: input, shape index: {}]
  %s2 = inlined_call_operand.vmem [shape: f32[1,64], index: 2, kind: input, shape index: {}]
  %s3 = inlined_call_operand.vmem [shape: f32[2,64], index: 3, kind: output, shape index: {}]
  %s4 = sld [smem:[#allocation0]]
  $region49: #{part_encoder_forward.5} parent=0
    _
  %s6 = ssub.s32 1, %s4
  %s7 = scalar_select 0, %s6, %s4
  loop: start=0, step=1, limit=4
  $region2: #{part_encoder_forward.5} parent=0 // loop_pre_header
    _
  $region3: #{part_encoder_forward.5} parent=0 // loop_header
    %s9 = sphi 0, %s13
    %p10 = scmp.ge.s32.totalorder %s9, 4
    %s16 = sphi 0, %s28
    %s17 = sphi 0, %s24
    %s18 = sphi 0, %s16
    %s19 = sphi 0, %s17
    %s20 = sphi 0, %s18
    %s21 = sphi 0, %s19
    %s33 = sphi 0, %s35
    %s36 = sphi 0, %s33
    %s37 = sphi 0, %s36
    %s53 = sphi 0, %s37
    %s57 = sphi 0, %s57
    %s59 = sphi 0, %s57
    %s60 = sphi 0, %s59
    %s74 = sphi 0, %s60
    %s78 = sphi 0, %s78
    %s80 = sphi 0, %s78
    %s81 = sphi 0, %s80
    %s95 = sphi 0, %s81
    %s99 = sphi 0, %s99
    %s101 = sphi 0, %s99
    %s102 = sphi 0, %s101
    %s116 = sphi 0, %s102
  $region4: #{part_encoder_forward.5} parent=0 // loop_header_branch
    %12 = sbr.rel (%p10) target = $region8
  $region5: #{part_encoder_forward.5} parent=0 // loop_body
    %s14 = ssub.s32 %s9, 1
    %s15 = ssub.s32 %s9, 2
    %s22 = sadd.s32 1, %s17
    %p23 = scmp.ge.s32.totalorder %s22, 1
    %s24 = scalar_select %p23, 0, %s22
    %s25 = sadd.s32 1, %s16
    %s26 = scalar_select %p23, %s25, %s16
    %p27 = scmp.ge.s32.totalorder %s26, 2
    %s28 = scalar_select %p27, 0, %s26
    %s29 = ssub.s32 %s16, %s28
    %s30 = ssub.s32 %s17, %s24
    %s31 = sor.u32 %s29, %s30
    %p32 = scmp.eq.s32.totalorder %s31, 0
    %s34 = sadd.s32 %s33, 1
    %s35 = scalar_select %p32, %s33, %s34
    %p38 = pneg %p32
    %p39 = scmp.eq.s32.totalorder %s9, 1
    %p40 = por %p38, %p39
    %p41 = scmp.ne.s32.totalorder %s33, %s36
    %p42 = scmp.eq.s32.totalorder %s9, 0
    %p43 = por %p41, %p42
    %p44 = scmp.ne.s32.totalorder %s33, %s36
    %p45 = scmp.eq.s32.totalorder %s14, 1
    %p46 = por %p44, %p45
    %p47 = scmp.ne.s32.totalorder %s36, %s37
    %p48 = scmp.eq.s32.totalorder %s14, 0
    %p49 = por %p47, %p48
    %p50 = scmp.ne.s32.totalorder %s36, %s37
    %p51 = scmp.eq.s32.totalorder %s15, 1
    %p52 = por %p50, %p51
    %p54 = scmp.ne.s32.totalorder %s37, %s53
    %p55 = scmp.eq.s32.totalorder %s15, 0
    %p56 = por %p54, %p55
    %s58 = sadd.s32 %s57, 1
    %p61 = scmp.eq.s32.totalorder %s9, 1
    %p62 = scmp.ne.s32.totalorder %s57, %s59
    %p63 = scmp.eq.s32.totalorder %s9, 0
    %p64 = por %p62, %p63
    %p65 = scmp.ne.s32.totalorder %s57, %s59
    %p66 = scmp.eq.s32.totalorder %s14, 1
    %p67 = por %p65, %p66
    %p68 = scmp.ne.s32.totalorder %s59, %s60
    %p69 = scmp.eq.s32.totalorder %s14, 0
    %p70 = por %p68, %p69
    %p71 = scmp.ne.s32.totalorder %s59, %s60
    %p72 = scmp.eq.s32.totalorder %s15, 1
    %p73 = por %p71, %p72
    %p75 = scmp.ne.s32.totalorder %s60, %s74
    %p76 = scmp.eq.s32.totalorder %s15, 0
    %p77 = por %p75, %p76
    %s79 = sadd.s32 %s78, 1
    %p82 = scmp.eq.s32.totalorder %s9, 1
    %p83 = scmp.ne.s32.totalorder %s78, %s80
    %p84 = scmp.eq.s32.totalorder %s9, 0
    %p85 = por %p83, %p84
    %p86 = scmp.ne.s32.totalorder %s78, %s80
    %p87 = scmp.eq.s32.totalorder %s14, 1
    %p88 = por %p86, %p87
    %p89 = scmp.ne.s32.totalorder %s80, %s81
    %p90 = scmp.eq.s32.totalorder %s14, 0
    %p91 = por %p89, %p90
    %p92 = scmp.ne.s32.totalorder %s80, %s81
    %p93 = scmp.eq.s32.totalorder %s15, 1
    %p94 = por %p92, %p93
    %p96 = scmp.ne.s32.totalorder %s81, %s95
    %p97 = scmp.eq.s32.totalorder %s15, 0
    %p98 = por %p96, %p97
    %s100 = sadd.s32 %s99, 1
    %p103 = scmp.eq.s32.totalorder %s9, 1
    %p104 = scmp.ne.s32.totalorder %s99, %s101
    %p105 = scmp.eq.s32.totalorder %s9, 0
    %p106 = por %p104, %p105
    %p107 = scmp.ne.s32.totalorder %s99, %s101
    %p108 = scmp.eq.s32.totalorder %s14, 1
    %p109 = por %p107, %p108
    %p110 = scmp.ne.s32.totalorder %s101, %s102
    %p111 = scmp.eq.s32.totalorder %s14, 0
    %p112 = por %p110, %p111
    %p113 = scmp.ne.s32.totalorder %s101, %s102
    %p114 = scmp.eq.s32.totalorder %s15, 1
    %p115 = por %p113, %p114
    %p117 = scmp.ne.s32.totalorder %s102, %s116
    %p118 = scmp.eq.s32.totalorder %s15, 0
    %p119 = por %p117, %p118
    %p120 = scmp.le.s32.totalorder 1, %s9
    %p121 = scmp.lt.s32.totalorder %s9, 3
    %p122 = pnand %p120, %p121
    %p123 = pneg %p122
    // Predicated region
    $region9: #{part_encoder_forward.5} parent=5 // pred_check
      _
    $region10: #{part_encoder_forward.5} parent=5 // pred_check_branch
      %125 = sbr.rel (%p122) target = $region12
    $region11: #{part_encoder_forward.5} parent=5 // pred_region
      %s126 = ssub.s32 %s9, 1
      // Predicated region
      $region13: #{part_encoder_forward.5} parent=11 // pred_check
        %p127 = pneg %p70
      $region14: #{part_encoder_forward.5} parent=11 // pred_check_branch
        %129 = sbr.rel (%p127) target = $region16
      $region15: #{part_encoder_forward.5} parent=11 // pred_region
        _
      $region16: #{part_encoder_forward.5} parent=11 // pred_fallthru
        _
      // Predicated region
      $region17: #{part_encoder_forward.5} parent=11 // pred_check
        %p130 = pneg %p91
      $region18: #{part_encoder_forward.5} parent=11 // pred_check_branch
        %132 = sbr.rel (%p130) target = $region20
      $region19: #{part_encoder_forward.5} parent=11 // pred_region
        _
      $region20: #{part_encoder_forward.5} parent=11 // pred_fallthru
        _
    $region12: #{part_encoder_forward.5} parent=5 // pred_fallthru
      _
    %p133 = scmp.lt.s32.totalorder %s9, 2
    // Predicated region
    $region21: #{part_encoder_forward.5} parent=5 // pred_check
      %p134 = pneg %p133
    $region22: #{part_encoder_forward.5} parent=5 // pred_check_branch
      %136 = sbr.rel (%p134) target = $region24
    $region23: #{part_encoder_forward.5} parent=5 // pred_region
      // Predicated region
      $region25: #{part_encoder_forward.5} parent=23 // pred_check
        %p137 = pneg %p43
      $region26: #{part_encoder_forward.5} parent=23 // pred_check_branch
        %139 = sbr.rel (%p137) target = $region28
      $region27: #{part_encoder_forward.5} parent=23 // pred_region
        %s140 = smul.u32 2, %s17
        %p141 = scmp.lt.s32.totalorder %s16, 1
        %s142 = scalar_select %p141, %s16, 1
        %p143 = scmp.lt.s32.totalorder %s140, 1
        %s144 = scalar_select %p143, %s140, 1
        %s145 = smul.addr %s142, 2
        %s146 = sadd.s32 %s144, %s145
        %s147 = smul.addr %s146, 8
        %s148 = scalar_lea.vmem %s0, %s147
        %s149 = smul.u32 2, %s17
      $region28: #{part_encoder_forward.5} parent=23 // pred_fallthru
        _
    $region24: #{part_encoder_forward.5} parent=5 // pred_fallthru
      _
    %p150 = scmp.le.s32.totalorder 1, %s9
    %p151 = scmp.lt.s32.totalorder %s9, 3
    %p152 = pnand %p150, %p151
    %p153 = pneg %p152
    // Predicated region
    $region29: #{part_encoder_forward.5} parent=5 // pred_check
      _
    $region30: #{part_encoder_forward.5} parent=5 // pred_check_branch
      %155 = sbr.rel (%p152) target = $region32
    $region31: #{part_encoder_forward.5} parent=5 // pred_region
      %s156 = ssub.s32 %s9, 1
      %s157 = smul.u32 2, %s19
      %p158 = scmp.lt.s32.totalorder %s18, 1
      %s159 = scalar_select %p158, %s18, 1
      %p160 = scmp.lt.s32.totalorder %s157, 1
      %s161 = scalar_select %p160, %s157, 1
      %s162 = smul.addr %s159, 2
      %s163 = sadd.s32 %s161, %s162
      %s164 = smul.addr %s163, 8
      %s165 = scalar_lea.vmem %s0, %s164
      %p166 = pneg %p49
      %p167 = pneg %p46
      %p168 = pneg %p70
      %p169 = pneg %p67
      %p170 = pneg %p91
      %p171 = pneg %p88
      %p172 = pneg %p112
      %p173 = pneg %p109
      %s174 = smul.u32 2, %s19
      %p175 = scmp.lt.s32.totalorder %s18, 1
      %s176 = scalar_select %p175, %s18, 1
      %p177 = scmp.lt.s32.totalorder %s174, 1
      %s178 = scalar_select %p177, %s174, 1
      %s179 = smul.addr %s176, 2
      %s180 = sadd.s32 %s178, %s179
      %s181 = smul.addr %s180, 8
      %s182 = scalar_lea.vmem %s0, %s181
      %s183 = smul.u32 2, %s19
      %v184 = vld [vmem:[%s182] sm:$0xff]
      %v185 = vld [vmem:[%s182 + $0x8] sm:$0xff]
      %v186 = vld [vmem:[%s1] sm:$0x7]
      %188 = vset.pattern.permute.xlu0 0
      %189 = vperm.xlu0 %188, %v184
      %v190 = vpop.permute.xlu0 %189
      %193 = vset.pattern.permute.xlu0 0
      %194 = vperm.xlu0 %193, %v185
      %v195 = vpop.permute.xlu0 %194
      %v197 = vperm.slane %v186, 0
      %v198 = vmul.f32 %v190, %v197
      %v199 = vmul.f32 %v195, %v197
      %200 = vset.pattern.permute.xlu0 1
      %201 = vperm.xlu0 %200, %v184
      %v202 = vpop.permute.xlu0 %201
      %204 = vset.pattern.permute.xlu0 1
      %205 = vperm.xlu0 %204, %v185
      %v206 = vpop.permute.xlu0 %205
      %v208 = vperm.slane %v186, 1
      %v209 = vmul.f32 %v202, %v208
      %v210 = vmul.f32 %v206, %v208
      %v211 = vadd.f32 %v198, %v209
      %v212 = vadd.f32 %v199, %v210
      %213 = vset.pattern.permute.xlu0 2
      %214 = vperm.xlu0 %213, %v184
      %v215 = vpop.permute.xlu0 %214
      %217 = vset.pattern.permute.xlu0 2
      %218 = vperm.xlu0 %217, %v185
      %v219 = vpop.permute.xlu0 %218
      %v221 = vperm.slane %v186, 2
      %v222 = vmul.f32 %v215, %v221
      %v223 = vmul.f32 %v219, %v221
      %v224 = vadd.f32 %v211, %v222
      %v225 = vadd.f32 %v212, %v223
      %v226 = vld [vmem:[%s2] sm:$0x1]
      %v228 = vperm.slane %v226, 0
      %v230 = vadd.f32 %v224, %v228
      %v231 = vadd.f32 %v225, %v228
      %p232 = scmp.eq.s32.totalorder %s18, 0
      %p233 = scmp.eq.s32.totalorder %s19, 0
      %p234 = pnand %p232, %p233
      %p235 = pneg %p234
      // Predicated region
      $region33: #{part_encoder_forward.5} parent=31 // pred_check
        _
      $region34: #{part_encoder_forward.5} parent=31 // pred_check_branch
        %237 = sbr.rel (%p234) target = $region36
      $region35: #{part_encoder_forward.5} parent=31 // pred_region
        %vm238 = vcmask 517120
        %239 = vst.msk [vmem:[%s3] sm:$0x3] %vm238, 0.0
      $region36: #{part_encoder_forward.5} parent=31 // pred_fallthru
        _
      %v240 = vld [vmem:[%s3] sm:$0x1]
      %vm241 = vcmask 523264
      %v242 = vsel %vm241, %v230, 0.0
      %v243 = vsel %vm241, %v231, 0.0
      %v244 = vadd.f32 %v242, %v243
      %v245 = vrot.slane %v244, 4
      %v246 = vadd.f32 %v244, %v245
      %v247 = vrot.slane %v246, 2
      %v248 = vadd.f32 %v246, %v247
      %v249 = vrot.slane %v248, 1
      %v250 = vadd.f32 %v248, %v249
      %v251 = vadd.f32 %v240, %v250
      %vm252 = vcmask 516096
      %253 = vst.msk [vmem:[%s3] sm:$0x1] %vm252, %v251
      %v254 = vld [vmem:[%s3 + $0x1] sm:$0x1]
      %v255 = vmul.f32 %v230, %v230
      %v256 = vmul.f32 %v231, %v231
      %v257 = vsel %vm241, %v255, 0.0
      %v258 = vsel %vm241, %v256, 0.0
      %v259 = vadd.f32 %v257, %v258
      %v260 = vrot.slane %v259, 4
      %v261 = vadd.f32 %v259, %v260
      %v262 = vrot.slane %v261, 2
      %v263 = vadd.f32 %v261, %v262
      %v264 = vrot.slane %v263, 1
      %v265 = vadd.f32 %v263, %v264
      %v266 = vadd.f32 %v254, %v265
      %267 = vst.msk [vmem:[%s3 + $0x1] sm:$0x1] %vm252, %v266
      // Predicated region
      $region37: #{part_encoder_forward.5} parent=31 // pred_check
        %p268 = pneg %p109
      $region38: #{part_encoder_forward.5} parent=31 // pred_check_branch
        %270 = sbr.rel (%p268) target = $region40
      $region39: #{part_encoder_forward.5} parent=31 // pred_region
        _
      $region40: #{part_encoder_forward.5} parent=31 // pred_fallthru
        _
      // Predicated region
      $region41: #{part_encoder_forward.5} parent=31 // pred_check
        %p271 = pneg %p109
      $region42: #{part_encoder_forward.5} parent=31 // pred_check_branch
        %273 = sbr.rel (%p271) target = $region44
      $region43: #{part_encoder_forward.5} parent=31 // pred_region
        _
      $region44: #{part_encoder_forward.5} parent=31 // pred_fallthru
        _
    $region32: #{part_encoder_forward.5} parent=5 // pred_fallthru
      _
    %p274 = scmp.le.s32.totalorder 2, %s9
    // Predicated region
    $region45: #{part_encoder_forward.5} parent=5 // pred_check
      %p275 = pneg %p274
    $region46: #{part_encoder_forward.5} parent=5 // pred_check_branch
      %277 = sbr.rel (%p275) target = $region48
    $region47: #{part_encoder_forward.5} parent=5 // pred_region
      %s278 = ssub.s32 %s9, 2
    $region48: #{part_encoder_forward.5} parent=5 // pred_fallthru
      _
  $region6: #{part_encoder_forward.5} parent=0 // loop_footer
    %s13 = sadd.s32 1, %s9
  $region7: #{part_encoder_forward.5} parent=0 // loop_footer_branch
    %8 = sbr.rel target = $region3
  $region8: #{part_encoder_forward.5} parent=0 // loop_exit
    _

// kernel: part_encoder_forward.7
$region0: #{part_encoder_forward.7}
  #allocation0 [shape = 'u32[]', space=smem, size = 0x4, offset = 0x4, fixed_abs, tag = 'smem constant byte address 0x4 - core index']
  #allocation1 [shape = 'u32[72,128]{1,0:T(1,128)}', space=vmem, size = 0x9000, scoped, tag = 'internal scratch']
  %s0 = inlined_call_operand.vmem [shape: f32[2,16,128], index: 0, kind: input, shape index: {}]
  %s1 = inlined_call_operand.vmem [shape: f32[2,128], index: 1, kind: input, shape index: {}]
  %s2 = inlined_call_operand.vmem [shape: f32[1,128], index: 2, kind: input, shape index: {}]
  %s3 = inlined_call_operand.vmem [shape: f32[1,128], index: 3, kind: input, shape index: {}]
  %s4 = inlined_call_operand.vmem [shape: bf16[128,128], index: 4, kind: input, shape index: {}]
  %s5 = inlined_call_operand.vmem [shape: f32[1,128], index: 5, kind: input, shape index: {}]
  %s6 = inlined_call_operand.vmem [shape: f32[2,16,128], index: 6, kind: output, shape index: {0}]
  %s7 = inlined_call_operand.vmem [shape: f32[2,128], index: 7, kind: output, shape index: {1}]
  %8 = xla_tuple %s6, %s7
  %s9 = sld [smem:[#allocation0]]
  $region69: #{part_encoder_forward.7} parent=0
    _
  %s11 = ssub.s32 1, %s9
  %s12 = scalar_select 0, %s11, %s9
  loop: start=0, step=1, limit=4
  $region2: #{part_encoder_forward.7} parent=0 // loop_pre_header
    _
  $region3: #{part_encoder_forward.7} parent=0 // loop_header
    %s14 = sphi 0, %s18
    %p15 = scmp.ge.s32.totalorder %s14, 4
    %s21 = sphi 0, %s33
    %s22 = sphi 0, %s29
    %s23 = sphi 0, %s21
    %s24 = sphi 0, %s22
    %s25 = sphi 0, %s23
    %s26 = sphi 0, %s24
    %s38 = sphi 0, %s40
    %s41 = sphi 0, %s38
    %s42 = sphi 0, %s41
    %s58 = sphi 0, %s42
    %s62 = sphi 0, %s62
    %s64 = sphi 0, %s62
    %s65 = sphi 0, %s64
    %s79 = sphi 0, %s65
    %s83 = sphi 0, %s83
    %s85 = sphi 0, %s83
    %s86 = sphi 0, %s85
    %s100 = sphi 0, %s86
    %s104 = sphi 0, %s104
    %s106 = sphi 0, %s104
    %s107 = sphi 0, %s106
    %s121 = sphi 0, %s107
    %s125 = sphi 0, %s125
    %s127 = sphi 0, %s125
    %s128 = sphi 0, %s127
    %s142 = sphi 0, %s128
    %s146 = sphi 0, %s146
    %s148 = sphi 0, %s146
    %s149 = sphi 0, %s148
    %s163 = sphi 0, %s149
    %s171 = sphi 0, %s173
    %s174 = sphi 0, %s171
    %s175 = sphi 0, %s174
    %s191 = sphi 0, %s175
    %s195 = sphi 0, %s195
    %s197 = sphi 0, %s195
    %s198 = sphi 0, %s197
    %s212 = sphi 0, %s198
  $region4: #{part_encoder_forward.7} parent=0 // loop_header_branch
    %17 = sbr.rel (%p15) target = $region8
  $region5: #{part_encoder_forward.7} parent=0 // loop_body
    %s19 = ssub.s32 %s14, 1
    %s20 = ssub.s32 %s14, 2
    %s27 = sadd.s32 1, %s22
    %p28 = scmp.ge.s32.totalorder %s27, 1
    %s29 = scalar_select %p28, 0, %s27
    %s30 = sadd.s32 1, %s21
    %s31 = scalar_select %p28, %s30, %s21
    %p32 = scmp.ge.s32.totalorder %s31, 2
    %s33 = scalar_select %p32, 0, %s31
    %s34 = ssub.s32 %s21, %s33
    %s35 = ssub.s32 %s22, %s29
    %s36 = sor.u32 %s34, %s35
    %p37 = scmp.eq.s32.totalorder %s36, 0
    %s39 = sadd.s32 %s38, 1
    %s40 = scalar_select %p37, %s38, %s39
    %p43 = pneg %p37
    %p44 = scmp.eq.s32.totalorder %s14, 1
    %p45 = por %p43, %p44
    %p46 = scmp.ne.s32.totalorder %s38, %s41
    %p47 = scmp.eq.s32.totalorder %s14, 0
    %p48 = por %p46, %p47
    %p49 = scmp.ne.s32.totalorder %s38, %s41
    %p50 = scmp.eq.s32.totalorder %s19, 1
    %p51 = por %p49, %p50
    %p52 = scmp.ne.s32.totalorder %s41, %s42
    %p53 = scmp.eq.s32.totalorder %s19, 0
    %p54 = por %p52, %p53
    %p55 = scmp.ne.s32.totalorder %s41, %s42
    %p56 = scmp.eq.s32.totalorder %s20, 1
    %p57 = por %p55, %p56
    %p59 = scmp.ne.s32.totalorder %s42, %s58
    %p60 = scmp.eq.s32.totalorder %s20, 0
    %p61 = por %p59, %p60
    %s63 = sadd.s32 %s62, 1
    %p66 = scmp.eq.s32.totalorder %s14, 1
    %p67 = scmp.ne.s32.totalorder %s62, %s64
    %p68 = scmp.eq.s32.totalorder %s14, 0
    %p69 = por %p67, %p68
    %p70 = scmp.ne.s32.totalorder %s62, %s64
    %p71 = scmp.eq.s32.totalorder %s19, 1
    %p72 = por %p70, %p71
    %p73 = scmp.ne.s32.totalorder %s64, %s65
    %p74 = scmp.eq.s32.totalorder %s19, 0
    %p75 = por %p73, %p74
    %p76 = scmp.ne.s32.totalorder %s64, %s65
    %p77 = scmp.eq.s32.totalorder %s20, 1
    %p78 = por %p76, %p77
    %p80 = scmp.ne.s32.totalorder %s65, %s79
    %p81 = scmp.eq.s32.totalorder %s20, 0
    %p82 = por %p80, %p81
    %s84 = sadd.s32 %s83, 1
    %p87 = scmp.eq.s32.totalorder %s14, 1
    %p88 = scmp.ne.s32.totalorder %s83, %s85
    %p89 = scmp.eq.s32.totalorder %s14, 0
    %p90 = por %p88, %p89
    %p91 = scmp.ne.s32.totalorder %s83, %s85
    %p92 = scmp.eq.s32.totalorder %s19, 1
    %p93 = por %p91, %p92
    %p94 = scmp.ne.s32.totalorder %s85, %s86
    %p95 = scmp.eq.s32.totalorder %s19, 0
    %p96 = por %p94, %p95
    %p97 = scmp.ne.s32.totalorder %s85, %s86
    %p98 = scmp.eq.s32.totalorder %s20, 1
    %p99 = por %p97, %p98
    %p101 = scmp.ne.s32.totalorder %s86, %s100
    %p102 = scmp.eq.s32.totalorder %s20, 0
    %p103 = por %p101, %p102
    %s105 = sadd.s32 %s104, 1
    %p108 = scmp.eq.s32.totalorder %s14, 1
    %p109 = scmp.ne.s32.totalorder %s104, %s106
    %p110 = scmp.eq.s32.totalorder %s14, 0
    %p111 = por %p109, %p110
    %p112 = scmp.ne.s32.totalorder %s104, %s106
    %p113 = scmp.eq.s32.totalorder %s19, 1
    %p114 = por %p112, %p113
    %p115 = scmp.ne.s32.totalorder %s106, %s107
    %p116 = scmp.eq.s32.totalorder %s19, 0
    %p117 = por %p115, %p116
    %p118 = scmp.ne.s32.totalorder %s106, %s107
    %p119 = scmp.eq.s32.totalorder %s20, 1
    %p120 = por %p118, %p119
    %p122 = scmp.ne.s32.totalorder %s107, %s121
    %p123 = scmp.eq.s32.totalorder %s20, 0
    %p124 = por %p122, %p123
    %s126 = sadd.s32 %s125, 1
    %p129 = scmp.eq.s32.totalorder %s14, 1
    %p130 = scmp.ne.s32.totalorder %s125, %s127
    %p131 = scmp.eq.s32.totalorder %s14, 0
    %p132 = por %p130, %p131
    %p133 = scmp.ne.s32.totalorder %s125, %s127
    %p134 = scmp.eq.s32.totalorder %s19, 1
    %p135 = por %p133, %p134
    %p136 = scmp.ne.s32.totalorder %s127, %s128
    %p137 = scmp.eq.s32.totalorder %s19, 0
    %p138 = por %p136, %p137
    %p139 = scmp.ne.s32.totalorder %s127, %s128
    %p140 = scmp.eq.s32.totalorder %s20, 1
    %p141 = por %p139, %p140
    %p143 = scmp.ne.s32.totalorder %s128, %s142
    %p144 = scmp.eq.s32.totalorder %s20, 0
    %p145 = por %p143, %p144
    %s147 = sadd.s32 %s146, 1
    %p150 = scmp.eq.s32.totalorder %s14, 1
    %p151 = scmp.ne.s32.totalorder %s146, %s148
    %p152 = scmp.eq.s32.totalorder %s14, 0
    %p153 = por %p151, %p152
    %p154 = scmp.ne.s32.totalorder %s146, %s148
    %p155 = scmp.eq.s32.totalorder %s19, 1
    %p156 = por %p154, %p155
    %p157 = scmp.ne.s32.totalorder %s148, %s149
    %p158 = scmp.eq.s32.totalorder %s19, 0
    %p159 = por %p157, %p158
    %p160 = scmp.ne.s32.totalorder %s148, %s149
    %p161 = scmp.eq.s32.totalorder %s20, 1
    %p162 = por %p160, %p161
    %p164 = scmp.ne.s32.totalorder %s149, %s163
    %p165 = scmp.eq.s32.totalorder %s20, 0
    %p166 = por %p164, %p165
    %s167 = ssub.s32 %s21, %s33
    %s168 = ssub.s32 %s22, %s29
    %s169 = sor.u32 %s167, %s168
    %p170 = scmp.eq.s32.totalorder %s169, 0
    %s172 = sadd.s32 %s171, 1
    %s173 = scalar_select %p170, %s171, %s172
    %p176 = pneg %p170
    %p177 = scmp.eq.s32.totalorder %s14, 1
    %p178 = por %p176, %p177
    %p179 = scmp.ne.s32.totalorder %s171, %s174
    %p180 = scmp.eq.s32.totalorder %s14, 0
    %p181 = por %p179, %p180
    %p182 = scmp.ne.s32.totalorder %s171, %s174
    %p183 = scmp.eq.s32.totalorder %s19, 1
    %p184 = por %p182, %p183
    %p185 = scmp.ne.s32.totalorder %s174, %s175
    %p186 = scmp.eq.s32.totalorder %s19, 0
    %p187 = por %p185, %p186
    %p188 = scmp.ne.s32.totalorder %s174, %s175
    %p189 = scmp.eq.s32.totalorder %s20, 1
    %p190 = por %p188, %p189
    %p192 = scmp.ne.s32.totalorder %s175, %s191
    %p193 = scmp.eq.s32.totalorder %s20, 0
    %p194 = por %p192, %p193
    %s196 = sadd.s32 %s195, 1
    %p199 = scmp.eq.s32.totalorder %s14, 1
    %p200 = scmp.ne.s32.totalorder %s195, %s197
    %p201 = scmp.eq.s32.totalorder %s14, 0
    %p202 = por %p200, %p201
    %p203 = scmp.ne.s32.totalorder %s195, %s197
    %p204 = scmp.eq.s32.totalorder %s19, 1
    %p205 = por %p203, %p204
    %p206 = scmp.ne.s32.totalorder %s197, %s198
    %p207 = scmp.eq.s32.totalorder %s19, 0
    %p208 = por %p206, %p207
    %p209 = scmp.ne.s32.totalorder %s197, %s198
    %p210 = scmp.eq.s32.totalorder %s20, 1
    %p211 = por %p209, %p210
    %p213 = scmp.ne.s32.totalorder %s198, %s212
    %p214 = scmp.eq.s32.totalorder %s20, 0
    %p215 = por %p213, %p214
    %p216 = scmp.le.s32.totalorder 1, %s14
    %p217 = scmp.lt.s32.totalorder %s14, 3
    %p218 = pnand %p216, %p217
    %p219 = pneg %p218
    // Predicated region
    $region9: #{part_encoder_forward.7} parent=5 // pred_check
      _
    $region10: #{part_encoder_forward.7} parent=5 // pred_check_branch
      %221 = sbr.rel (%p218) target = $region12
    $region11: #{part_encoder_forward.7} parent=5 // pred_region
      %s222 = ssub.s32 %s14, 1
      // Predicated region
      $region13: #{part_encoder_forward.7} parent=11 // pred_check
        %p223 = pneg %p75
      $region14: #{part_encoder_forward.7} parent=11 // pred_check_branch
        %225 = sbr.rel (%p223) target = $region16
      $region15: #{part_encoder_forward.7} parent=11 // pred_region
        _
      $region16: #{part_encoder_forward.7} parent=11 // pred_fallthru
        _
      // Predicated region
      $region17: #{part_encoder_forward.7} parent=11 // pred_check
        %p226 = pneg %p96
      $region18: #{part_encoder_forward.7} parent=11 // pred_check_branch
        %228 = sbr.rel (%p226) target = $region20
      $region19: #{part_encoder_forward.7} parent=11 // pred_region
        _
      $region20: #{part_encoder_forward.7} parent=11 // pred_fallthru
        _
      // Predicated region
      $region21: #{part_encoder_forward.7} parent=11 // pred_check
        %p229 = pneg %p117
      $region22: #{part_encoder_forward.7} parent=11 // pred_check_branch
        %231 = sbr.rel (%p229) target = $region24
      $region23: #{part_encoder_forward.7} parent=11 // pred_region
        _
      $region24: #{part_encoder_forward.7} parent=11 // pred_fallthru
        _
      // Predicated region
      $region25: #{part_encoder_forward.7} parent=11 // pred_check
        %p232 = pneg %p138
      $region26: #{part_encoder_forward.7} parent=11 // pred_check_branch
        %234 = sbr.rel (%p232) target = $region28
      $region27: #{part_encoder_forward.7} parent=11 // pred_region
        _
      $region28: #{part_encoder_forward.7} parent=11 // pred_fallthru
        _
      // Predicated region
      $region29: #{part_encoder_forward.7} parent=11 // pred_check
        %p235 = pneg %p159
      $region30: #{part_encoder_forward.7} parent=11 // pred_check_branch
        %237 = sbr.rel (%p235) target = $region32
      $region31: #{part_encoder_forward.7} parent=11 // pred_region
        _
      $region32: #{part_encoder_forward.7} parent=11 // pred_fallthru
        _
    $region12: #{part_encoder_forward.7} parent=5 // pred_fallthru
      _
    %p238 = scmp.lt.s32.totalorder %s14, 2
    // Predicated region
    $region33: #{part_encoder_forward.7} parent=5 // pred_check
      %p239 = pneg %p238
    $region34: #{part_encoder_forward.7} parent=5 // pred_check_branch
      %241 = sbr.rel (%p239) target = $region36
    $region35: #{part_encoder_forward.7} parent=5 // pred_region
      // Predicated region
      $region37: #{part_encoder_forward.7} parent=35 // pred_check
        %p242 = pneg %p48
      $region38: #{part_encoder_forward.7} parent=35 // pred_check_branch
        %244 = sbr.rel (%p242) target = $region40
      $region39: #{part_encoder_forward.7} parent=35 // pred_region
        %s245 = smul.u32 2, %s22
        %p246 = scmp.lt.s32.totalorder %s21, 1
        %s247 = scalar_select %p246, %s21, 1
        %p248 = scmp.lt.s32.totalorder %s245, 1
        %s249 = scalar_select %p248, %s245, 1
        %s250 = smul.addr %s247, 2
        %s251 = sadd.s32 %s249, %s250
        %s252 = smul.addr %s251, 8
        %s253 = scalar_lea.vmem %s0, %s252
        %s254 = smul.u32 2, %s22
      $region40: #{part_encoder_forward.7} parent=35 // pred_fallthru
        _
    $region36: #{part_encoder_forward.7} parent=5 // pred_fallthru
      _
    %p255 = scmp.le.s32.totalorder 1, %s14
    %p256 = scmp.lt.s32.totalorder %s14, 3
    %p257 = pnand %p255, %p256
    %p258 = pneg %p257
    // Predicated region
    $region41: #{part_encoder_forward.7} parent=5 // pred_check
      _
    $region42: #{part_encoder_forward.7} parent=5 // pred_check_branch
      %260 = sbr.rel (%p257) target = $region44
    $region43: #{part_encoder_forward.7} parent=5 // pred_region
      %s261 = ssub.s32 %s14, 1
      %s262 = smul.u32 2, %s24
      %p263 = scmp.lt.s32.totalorder %s23, 1
      %s264 = scalar_select %p263, %s23, 1
      %p265 = scmp.lt.s32.totalorder %s262, 1
      %s266 = scalar_select %p265, %s262, 1
      %s267 = smul.addr %s264, 2
      %s268 = sadd.s32 %s266, %s267
      %s269 = smul.addr %s268, 8
      %s270 = scalar_lea.vmem %s0, %s269
      %p271 = pneg %p54
      %p272 = pneg %p51
      %p273 = pneg %p75
      %p274 = pneg %p72
      %p275 = pneg %p96
      %p276 = pneg %p93
      %p277 = pneg %p117
      %p278 = pneg %p114
      %p279 = pneg %p138
      %p280 = pneg %p135
      %p281 = pneg %p159
      %p282 = pneg %p156
      %p283 = pneg %p187
      %p284 = pneg %p184
      %s285 = smul.u32 2, %s24
      %p286 = scmp.lt.s32.totalorder %s23, 1
      %s287 = scalar_select %p286, %s23, 1
      %p288 = scmp.lt.s32.totalorder %s285, 1
      %s289 = scalar_select %p288, %s285, 1
      %s290 = smul.addr %s287, 2
      %s291 = sadd.s32 %s289, %s290
      %s292 = smul.addr %s291, 8
      %s293 = scalar_lea.vmem %s6, %s292
      %p294 = pneg %p208
      %p295 = pneg %p205
      %s296 = smul.u32 2, %s24
      %p297 = scmp.lt.s32.totalorder %s23, 1
      %s298 = scalar_select %p297, %s23, 1
      %p299 = scmp.lt.s32.totalorder %s296, 1
      %s300 = scalar_select %p299, %s296, 1
      %s301 = smul.addr %s298, 2
      %s302 = sadd.s32 %s300, %s301
      %s303 = smul.addr %s302, 8
      %s304 = scalar_lea.vmem %s0, %s303
      %s305 = smul.u32 2, %s24
      %s306 = smul.u32 2, %s24
      %p307 = scmp.lt.s32.totalorder %s23, 1
      %s308 = scalar_select %p307, %s23, 1
      %p309 = scmp.lt.s32.totalorder %s306, 1
      %s310 = scalar_select %p309, %s306, 1
      %s311 = smul.addr %s308, 2
      %s312 = sadd.s32 %s310, %s311
      %s313 = smul.addr %s312, 8
      %s314 = scalar_lea.vmem %s6, %s313
      %s315 = smul.u32 2, %s24
      %v316 = vld [vmem:[%s304] sm:$0xff]
      %v317 = vld [vmem:[%s304 + $0x8] sm:$0xff]
      %v318 = vld [vmem:[%s1] sm:$0x1]
      %v319 = vmul.f32 %v318, 0.03125
      %v320 = vld [vmem:[%s1 + $0x1] sm:$0x1]
      %v321 = vmul.f32 %v320, 0.03125
      %v322 = vmul.f32 %v319, %v319
      %v323 = vsub.f32 %v321, %v322
      %v324 = vmax.f32 %v323, 0.0
      %v325 = vld [vmem:[%s2] sm:$0x1]
      %v326 = vadd.f32 %v324, 1e-05
      %v327 = vrsqrt.pop %v326
      %v328 = vmul.f32 %v327, %v326
      %v329 = vmul.f32 %v328, %v327
      %v330 = vmul.f32 0.5, %v329
      %v331 = vsub.f32 1.5, %v330
      %v332 = vmul.f32 %v327, %v331
      %vm333 = vweird.f32 %v326
      %vm334 = vweird.f32 %v327
      %vm335 = vmor %vm333, %vm334
      %v336 = vsel %vm335, %v327, %v332
      %v337 = vmul.f32 %v325, %v336
      %v338 = vld [vmem:[%s3] sm:$0x1]
      %v339 = vmul.f32 %v319, %v337
      %v340 = vsub.f32 %v338, %v339
      %v342 = vperm.slane %v337, 0
      %v344 = vmul.f32 %v316, %v342
      %v345 = vmul.f32 %v317, %v342
      %v347 = vperm.slane %v340, 0
      %v349 = vadd.f32 %v344, %v347
      %v350 = vadd.f32 %v345, %v347
      %v351 = vmax.f32 %v349, 0.0
      %v352 = vmax.f32 %v350, 0.0
      %v353 = vpack.c.bf16 %v352, %v351
      %v354 = vld [vmem:[%s4] sm:$0xf]
      %v355 = vld [vmem:[%s4 + $0x4] sm:$0xf]
      %v356 = vld [vmem:[%s4 + $0x8] sm:$0xf]
      %v357 = vld [vmem:[%s4 + $0xc] sm:$0xf]
      %v358 = vld [vmem:[%s4 + $0x10] sm:$0xf]
      %v359 = vld [vmem:[%s4 + $0x14] sm:$0xf]
      %v360 = vld [vmem:[%s4 + $0x18] sm:$0xf]
      %v361 = vld [vmem:[%s4 + $0x1c] sm:$0xf]
      %v362 = vld [vmem:[%s4 + $0x20] sm:$0xf]
      %v363 = vld [vmem:[%s4 + $0x24] sm:$0xf]
      %v364 = vld [vmem:[%s4 + $0x28] sm:$0xf]
      %v365 = vld [vmem:[%s4 + $0x2c] sm:$0xf]
      %v366 = vld [vmem:[%s4 + $0x30] sm:$0xf]
      %v367 = vld [vmem:[%s4 + $0x34] sm:$0xf]
      %v368 = vld [vmem:[%s4 + $0x38] sm:$0xf]
      %v369 = vld [vmem:[%s4 + $0x3c] sm:$0xf]
      %v370 = vld [vmem:[%s5] sm:$0x1]
      %v372 = vperm.slane %v370, 0
      %v390 = vunpack.c.l.b16 %v354
      %v391 = vunpack.c.l.b16 %v355
      %v392 = vunpack.c.l.b16 %v356
      %v393 = vunpack.c.l.b16 %v357
      %v394 = vunpack.c.l.b16 %v358
      %v395 = vunpack.c.l.b16 %v359
      %v396 = vunpack.c.l.b16 %v360
      %v397 = vunpack.c.l.b16 %v361
      %v398 = vunpack.c.l.b16 %v362
      %v399 = vunpack.c.l.b16 %v363
      %v400 = vunpack.c.l.b16 %v364
      %v401 = vunpack.c.l.b16 %v365
      %v402 = vunpack.c.l.b16 %v366
      %v403 = vunpack.c.l.b16 %v367
      %v404 = vunpack.c.l.b16 %v368
      %v405 = vunpack.c.l.b16 %v369
      %v406 = vpack.c.b16 %v391, %v390
      %v407 = vpack.c.b16 %v393, %v392
      %v408 = vpack.c.b16 %v395, %v394
      %v409 = vpack.c.b16 %v397, %v396
      %v410 = vpack.c.b16 %v399, %v398
      %v411 = vpack.c.b16 %v401, %v400
      %v412 = vpack.c.b16 %v403, %v402
      %v413 = vpack.c.b16 %v405, %v404
      %422 = vmatpush.bf16.msra.mxu0 %v413
      %423 = vmatpush.bf16.msra.mxu0 %v412
      %424 = vmatpush.bf16.msra.mxu0 %v411
      %425 = vmatpush.bf16.msra.mxu0 %v410
      %426 = vmatpush.bf16.msra.mxu0 %v409
      %427 = vmatpush.bf16.msra.mxu0 %v408
      %428 = vmatpush.bf16.msra.mxu0 %v407
      %429 = vmatpush.bf16.msra.mxu0 %v406
      %430 = vmatmul.bf16.gmra.mxu0 %v353
      %v431 = vpop.f32.mrf.mxu0
      %v432 = vadd.f32 %v372, %v431
      %v433 = vpop.f32.mrf.mxu0
      %v434 = vadd.f32 %v372, %v433
      %435 = vdwg.mxu0
      %436 = vst [vmem:[%s314] sm:$0xff] %v432
      %437 = vst [vmem:[%s314 + $0x8] sm:$0xff] %v434
      %p438 = scmp.eq.s32.totalorder %s23, 0
      %p439 = scmp.eq.s32.totalorder %s24, 0
      %p440 = pnand %p438, %p439
      %p441 = pneg %p440
      // Predicated region
      $region45: #{part_encoder_forward.7} parent=43 // pred_check
        _
      $region46: #{part_encoder_forward.7} parent=43 // pred_check_branch
        %443 = sbr.rel (%p440) target = $region48
      $region47: #{part_encoder_forward.7} parent=43 // pred_region
        %444 = vst [vmem:[%s7] sm:$0x3] 0.0
      $region48: #{part_encoder_forward.7} parent=43 // pred_fallthru
        _
      %v445 = vld [vmem:[%s7] sm:$0x1]
      %v446 = vadd.f32 %v432, %v434
      %v447 = vrot.slane %v446, 4
      %v448 = vadd.f32 %v446, %v447
      %v449 = vrot.slane %v448, 2
      %v450 = vadd.f32 %v448, %v449
      %v451 = vrot.slane %v450, 1
      %v452 = vadd.f32 %v450, %v451
      %v453 = vadd.f32 %v445, %v452
      %454 = vst [vmem:[%s7] sm:$0x1] %v453
      %v455 = vld [vmem:[%s7 + $0x1] sm:$0x1]
      %v456 = vmul.f32 %v432, %v432
      %v457 = vmul.f32 %v434, %v434
      %v458 = vadd.f32 %v456, %v457
      %v459 = vrot.slane %v458, 4
      %v460 = vadd.f32 %v458, %v459
      %v461 = vrot.slane %v460, 2
      %v462 = vadd.f32 %v460, %v461
      %v463 = vrot.slane %v462, 1
      %v464 = vadd.f32 %v462, %v463
      %v465 = vadd.f32 %v455, %v464
      %466 = vst [vmem:[%s7 + $0x1] sm:$0x1] %v465
      %s467 = smul.u32 2, %s24
      %p468 = scmp.lt.s32.totalorder %s23, 1
      %s469 = scalar_select %p468, %s23, 1
      %p470 = scmp.lt.s32.totalorder %s467, 1
      %s471 = scalar_select %p470, %s467, 1
      %s472 = smul.addr %s469, 2
      %s473 = sadd.s32 %s471, %s472
      %s474 = smul.addr %s473, 8
      %s475 = scalar_lea.vmem %s6, %s474
      // Predicated region
      $region49: #{part_encoder_forward.7} parent=43 // pred_check
        %p476 = pneg %p184
      $region50: #{part_encoder_forward.7} parent=43 // pred_check_branch
        %478 = sbr.rel (%p476) target = $region52
      $region51: #{part_encoder_forward.7} parent=43 // pred_region
        %s479 = smul.u32 2, %s24
      $region52: #{part_encoder_forward.7} parent=43 // pred_fallthru
        _
      // Predicated region
      $region53: #{part_encoder_forward.7} parent=43 // pred_check
        %p480 = pneg %p205
      $region54: #{part_encoder_forward.7} parent=43 // pred_check_branch
        %482 = sbr.rel (%p480) target = $region56
      $region55: #{part_encoder_forward.7} parent=43 // pred_region
        _
      $region56: #{part_encoder_forward.7} parent=43 // pred_fallthru
        _
      // Predicated region
      $region57: #{part_encoder_forward.7} parent=43 // pred_check
        %p483 = pneg %p205
      $region58: #{part_encoder_forward.7} parent=43 // pred_check_branch
        %485 = sbr.rel (%p483) target = $region60
      $region59: #{part_encoder_forward.7} parent=43 // pred_region
        _
      $region60: #{part_encoder_forward.7} parent=43 // pred_fallthru
        _
    $region44: #{part_encoder_forward.7} parent=5 // pred_fallthru
      _
    %p486 = scmp.le.s32.totalorder 2, %s14
    // Predicated region
    $region61: #{part_encoder_forward.7} parent=5 // pred_check
      %p487 = pneg %p486
    $region62: #{part_encoder_forward.7} parent=5 // pred_check_branch
      %489 = sbr.rel (%p487) target = $region64
    $region63: #{part_encoder_forward.7} parent=5 // pred_region
      %s490 = ssub.s32 %s14, 2
      // Predicated region
      $region65: #{part_encoder_forward.7} parent=63 // pred_check
        %p491 = pneg %p190
      $region66: #{part_encoder_forward.7} parent=63 // pred_check_branch
        %493 = sbr.rel (%p491) target = $region68
      $region67: #{part_encoder_forward.7} parent=63 // pred_region
        %s494 = smul.u32 2, %s26
        %p495 = scmp.lt.s32.totalorder %s25, 1
        %s496 = scalar_select %p495, %s25, 1
        %p497 = scmp.lt.s32.totalorder %s494, 1
        %s498 = scalar_select %p497, %s494, 1
        %s499 = smul.addr %s496, 2
        %s500 = sadd.s32 %s498, %s499
        %s501 = smul.addr %s500, 8
        %s502 = scalar_lea.vmem %s6, %s501
      $region68: #{part_encoder_forward.7} parent=63 // pred_fallthru
        _
    $region64: #{part_encoder_forward.7} parent=5 // pred_fallthru
      _
  $region6: #{part_encoder_forward.7} parent=0 // loop_footer
    %s18 = sadd.s32 1, %s14
  $region7: #{part_encoder_forward.7} parent=0 // loop_footer_branch
    %13 = sbr.rel target = $region3
  $region8: #{part_encoder_forward.7} parent=0 // loop_exit
    _

// kernel: part_encoder_forward.9
$region0: #{part_encoder_forward.9}
  #allocation0 [shape = 'u32[]', space=smem, size = 0x4, offset = 0x4, fixed_abs, tag = 'smem constant byte address 0x4 - core index']
  #allocation1 [shape = 'u32[72,128]{1,0:T(1,128)}', space=vmem, size = 0x9000, scoped, tag = 'internal scratch']
  #allocation2 [shape = 'f32[1,128]{1,0:T(1,128)}', space=vmem, size = 0x200, scoped, tag = 'scratch operand']
  %s0 = inlined_call_operand.vmem [shape: f32[2,16,128], index: 0, kind: input, shape index: {}]
  %s1 = inlined_call_operand.vmem [shape: f32[2,128], index: 1, kind: input, shape index: {}]
  %s2 = inlined_call_operand.vmem [shape: f32[1,128], index: 2, kind: input, shape index: {}]
  %s3 = inlined_call_operand.vmem [shape: f32[1,128], index: 3, kind: input, shape index: {}]
  %s4 = inlined_call_operand.vmem [shape: bf16[128,128], index: 4, kind: input, shape index: {}]
  %s5 = inlined_call_operand.vmem [shape: f32[1,128], index: 5, kind: input, shape index: {}]
  %s6 = inlined_call_operand.hbm [shape: f32[2,1,128], index: 6, kind: output, shape index: {}]
  %s7 = sld [smem:[#allocation0]]
  $region69: #{part_encoder_forward.9} parent=0
    _
  %s9 = ssub.s32 1, %s7
  %s10 = scalar_select 0, %s9, %s7
  $region1: #{part_encoder_forward.9} parent=0
    #allocation3 [shape = 'u8[1024]{0}', space=vmem, size = 0x400, scoped, tag = 'output window, operand 0']
    #allocation4 [shape = 's32[2]{0}', space=sflag, size = 0x8, scoped, tag = 'scoped memory for part_encoder_forward.9']
    %11 = vsyncpa [#allocation4], 0
    %s12 = scalar_lea.sflag [#allocation4], 1
    %13 = vsyncpa %s12, 0
    loop: start=0, step=1, limit=4
    $region2: #{part_encoder_forward.9} parent=1 // loop_pre_header
      _
    $region3: #{part_encoder_forward.9} parent=1 // loop_header
      %s15 = sphi 0, %s19
      %p16 = scmp.ge.s32.totalorder %s15, 4
      %s22 = sphi 0, %s34
      %s23 = sphi 0, %s30
      %s24 = sphi 0, %s22
      %s25 = sphi 0, %s23
      %s26 = sphi 0, %s24
      %s27 = sphi 0, %s25
      %s39 = sphi 0, %s41
      %s42 = sphi 0, %s39
      %s43 = sphi 0, %s42
      %s59 = sphi 0, %s43
      %s63 = sphi 0, %s63
      %s65 = sphi 0, %s63
      %s66 = sphi 0, %s65
      %s80 = sphi 0, %s66
      %s84 = sphi 0, %s84
      %s86 = sphi 0, %s84
      %s87 = sphi 0, %s86
      %s101 = sphi 0, %s87
      %s105 = sphi 0, %s105
      %s107 = sphi 0, %s105
      %s108 = sphi 0, %s107
      %s122 = sphi 0, %s108
      %s126 = sphi 0, %s126
      %s128 = sphi 0, %s126
      %s129 = sphi 0, %s128
      %s143 = sphi 0, %s129
      %s147 = sphi 0, %s147
      %s149 = sphi 0, %s147
      %s150 = sphi 0, %s149
      %s164 = sphi 0, %s150
      %s170 = sphi 0, %s172
      %s173 = sphi 0, %s170
      %s174 = sphi 0, %s173
      %s190 = sphi 0, %s174
    $region4: #{part_encoder_forward.9} parent=1 // loop_header_branch
      %18 = sbr.rel (%p16) target = $region8
    $region5: #{part_encoder_forward.9} parent=1 // loop_body
      %s20 = ssub.s32 %s15, 1
      %s21 = ssub.s32 %s15, 2
      %s28 = sadd.s32 1, %s23
      %p29 = scmp.ge.s32.totalorder %s28, 1
      %s30 = scalar_select %p29, 0, %s28
      %s31 = sadd.s32 1, %s22
      %s32 = scalar_select %p29, %s31, %s22
      %p33 = scmp.ge.s32.totalorder %s32, 2
      %s34 = scalar_select %p33, 0, %s32
      %s35 = ssub.s32 %s22, %s34
      %s36 = ssub.s32 %s23, %s30
      %s37 = sor.u32 %s35, %s36
      %p38 = scmp.eq.s32.totalorder %s37, 0
      %s40 = sadd.s32 %s39, 1
      %s41 = scalar_select %p38, %s39, %s40
      %p44 = pneg %p38
      %p45 = scmp.eq.s32.totalorder %s15, 1
      %p46 = por %p44, %p45
      %p47 = scmp.ne.s32.totalorder %s39, %s42
      %p48 = scmp.eq.s32.totalorder %s15, 0
      %p49 = por %p47, %p48
      %p50 = scmp.ne.s32.totalorder %s39, %s42
      %p51 = scmp.eq.s32.totalorder %s20, 1
      %p52 = por %p50, %p51
      %p53 = scmp.ne.s32.totalorder %s42, %s43
      %p54 = scmp.eq.s32.totalorder %s20, 0
      %p55 = por %p53, %p54
      %p56 = scmp.ne.s32.totalorder %s42, %s43
      %p57 = scmp.eq.s32.totalorder %s21, 1
      %p58 = por %p56, %p57
      %p60 = scmp.ne.s32.totalorder %s43, %s59
      %p61 = scmp.eq.s32.totalorder %s21, 0
      %p62 = por %p60, %p61
      %s64 = sadd.s32 %s63, 1
      %p67 = scmp.eq.s32.totalorder %s15, 1
      %p68 = scmp.ne.s32.totalorder %s63, %s65
      %p69 = scmp.eq.s32.totalorder %s15, 0
      %p70 = por %p68, %p69
      %p71 = scmp.ne.s32.totalorder %s63, %s65
      %p72 = scmp.eq.s32.totalorder %s20, 1
      %p73 = por %p71, %p72
      %p74 = scmp.ne.s32.totalorder %s65, %s66
      %p75 = scmp.eq.s32.totalorder %s20, 0
      %p76 = por %p74, %p75
      %p77 = scmp.ne.s32.totalorder %s65, %s66
      %p78 = scmp.eq.s32.totalorder %s21, 1
      %p79 = por %p77, %p78
      %p81 = scmp.ne.s32.totalorder %s66, %s80
      %p82 = scmp.eq.s32.totalorder %s21, 0
      %p83 = por %p81, %p82
      %s85 = sadd.s32 %s84, 1
      %p88 = scmp.eq.s32.totalorder %s15, 1
      %p89 = scmp.ne.s32.totalorder %s84, %s86
      %p90 = scmp.eq.s32.totalorder %s15, 0
      %p91 = por %p89, %p90
      %p92 = scmp.ne.s32.totalorder %s84, %s86
      %p93 = scmp.eq.s32.totalorder %s20, 1
      %p94 = por %p92, %p93
      %p95 = scmp.ne.s32.totalorder %s86, %s87
      %p96 = scmp.eq.s32.totalorder %s20, 0
      %p97 = por %p95, %p96
      %p98 = scmp.ne.s32.totalorder %s86, %s87
      %p99 = scmp.eq.s32.totalorder %s21, 1
      %p100 = por %p98, %p99
      %p102 = scmp.ne.s32.totalorder %s87, %s101
      %p103 = scmp.eq.s32.totalorder %s21, 0
      %p104 = por %p102, %p103
      %s106 = sadd.s32 %s105, 1
      %p109 = scmp.eq.s32.totalorder %s15, 1
      %p110 = scmp.ne.s32.totalorder %s105, %s107
      %p111 = scmp.eq.s32.totalorder %s15, 0
      %p112 = por %p110, %p111
      %p113 = scmp.ne.s32.totalorder %s105, %s107
      %p114 = scmp.eq.s32.totalorder %s20, 1
      %p115 = por %p113, %p114
      %p116 = scmp.ne.s32.totalorder %s107, %s108
      %p117 = scmp.eq.s32.totalorder %s20, 0
      %p118 = por %p116, %p117
      %p119 = scmp.ne.s32.totalorder %s107, %s108
      %p120 = scmp.eq.s32.totalorder %s21, 1
      %p121 = por %p119, %p120
      %p123 = scmp.ne.s32.totalorder %s108, %s122
      %p124 = scmp.eq.s32.totalorder %s21, 0
      %p125 = por %p123, %p124
      %s127 = sadd.s32 %s126, 1
      %p130 = scmp.eq.s32.totalorder %s15, 1
      %p131 = scmp.ne.s32.totalorder %s126, %s128
      %p132 = scmp.eq.s32.totalorder %s15, 0
      %p133 = por %p131, %p132
      %p134 = scmp.ne.s32.totalorder %s126, %s128
      %p135 = scmp.eq.s32.totalorder %s20, 1
      %p136 = por %p134, %p135
      %p137 = scmp.ne.s32.totalorder %s128, %s129
      %p138 = scmp.eq.s32.totalorder %s20, 0
      %p139 = por %p137, %p138
      %p140 = scmp.ne.s32.totalorder %s128, %s129
      %p141 = scmp.eq.s32.totalorder %s21, 1
      %p142 = por %p140, %p141
      %p144 = scmp.ne.s32.totalorder %s129, %s143
      %p145 = scmp.eq.s32.totalorder %s21, 0
      %p146 = por %p144, %p145
      %s148 = sadd.s32 %s147, 1
      %p151 = scmp.eq.s32.totalorder %s15, 1
      %p152 = scmp.ne.s32.totalorder %s147, %s149
      %p153 = scmp.eq.s32.totalorder %s15, 0
      %p154 = por %p152, %p153
      %p155 = scmp.ne.s32.totalorder %s147, %s149
      %p156 = scmp.eq.s32.totalorder %s20, 1
      %p157 = por %p155, %p156
      %p158 = scmp.ne.s32.totalorder %s149, %s150
      %p159 = scmp.eq.s32.totalorder %s20, 0
      %p160 = por %p158, %p159
      %p161 = scmp.ne.s32.totalorder %s149, %s150
      %p162 = scmp.eq.s32.totalorder %s21, 1
      %p163 = por %p161, %p162
      %p165 = scmp.ne.s32.totalorder %s150, %s164
      %p166 = scmp.eq.s32.totalorder %s21, 0
      %p167 = por %p165, %p166
      %s168 = ssub.s32 %s22, %s34
      %p169 = scmp.eq.s32.totalorder %s168, 0
      %s171 = sadd.s32 %s170, 1
      %s172 = scalar_select %p169, %s170, %s171
      %p175 = pneg %p169
      %p176 = scmp.eq.s32.totalorder %s15, 1
      %p177 = por %p175, %p176
      %p178 = scmp.ne.s32.totalorder %s170, %s173
      %p179 = scmp.eq.s32.totalorder %s15, 0
      %p180 = por %p178, %p179
      %p181 = scmp.ne.s32.totalorder %s170, %s173
      %p182 = scmp.eq.s32.totalorder %s20, 1
      %p183 = por %p181, %p182
      %p184 = scmp.ne.s32.totalorder %s173, %s174
      %p185 = scmp.eq.s32.totalorder %s20, 0
      %p186 = por %p184, %p185
      %p187 = scmp.ne.s32.totalorder %s173, %s174
      %p188 = scmp.eq.s32.totalorder %s21, 1
      %p189 = por %p187, %p188
      %p191 = scmp.ne.s32.totalorder %s174, %s190
      %p192 = scmp.eq.s32.totalorder %s21, 0
      %p193 = por %p191, %p192
      %p194 = scmp.le.s32.totalorder 1, %s15
      %p195 = scmp.lt.s32.totalorder %s15, 3
      %p196 = pnand %p194, %p195
      %p197 = pneg %p196
      // Predicated region
      $region9: #{part_encoder_forward.9} parent=5 // pred_check
        _
      $region10: #{part_encoder_forward.9} parent=5 // pred_check_branch
        %199 = sbr.rel (%p196) target = $region12
      $region11: #{part_encoder_forward.9} parent=5 // pred_region
        %s200 = ssub.s32 %s15, 1
        // Predicated region
        $region13: #{part_encoder_forward.9} parent=11 // pred_check
          %p201 = pneg %p76
        $region14: #{part_encoder_forward.9} parent=11 // pred_check_branch
          %203 = sbr.rel (%p201) target = $region16
        $region15: #{part_encoder_forward.9} parent=11 // pred_region
          _
        $region16: #{part_encoder_forward.9} parent=11 // pred_fallthru
          _
        // Predicated region
        $region17: #{part_encoder_forward.9} parent=11 // pred_check
          %p204 = pneg %p97
        $region18: #{part_encoder_forward.9} parent=11 // pred_check_branch
          %206 = sbr.rel (%p204) target = $region20
        $region19: #{part_encoder_forward.9} parent=11 // pred_region
          _
        $region20: #{part_encoder_forward.9} parent=11 // pred_fallthru
          _
        // Predicated region
        $region21: #{part_encoder_forward.9} parent=11 // pred_check
          %p207 = pneg %p118
        $region22: #{part_encoder_forward.9} parent=11 // pred_check_branch
          %209 = sbr.rel (%p207) target = $region24
        $region23: #{part_encoder_forward.9} parent=11 // pred_region
          _
        $region24: #{part_encoder_forward.9} parent=11 // pred_fallthru
          _
        // Predicated region
        $region25: #{part_encoder_forward.9} parent=11 // pred_check
          %p210 = pneg %p139
        $region26: #{part_encoder_forward.9} parent=11 // pred_check_branch
          %212 = sbr.rel (%p210) target = $region28
        $region27: #{part_encoder_forward.9} parent=11 // pred_region
          _
        $region28: #{part_encoder_forward.9} parent=11 // pred_fallthru
          _
        // Predicated region
        $region29: #{part_encoder_forward.9} parent=11 // pred_check
          %p213 = pneg %p160
        $region30: #{part_encoder_forward.9} parent=11 // pred_check_branch
          %215 = sbr.rel (%p213) target = $region32
        $region31: #{part_encoder_forward.9} parent=11 // pred_region
          _
        $region32: #{part_encoder_forward.9} parent=11 // pred_fallthru
          _
      $region12: #{part_encoder_forward.9} parent=5 // pred_fallthru
        _
      %p216 = scmp.lt.s32.totalorder %s15, 2
      // Predicated region
      $region33: #{part_encoder_forward.9} parent=5 // pred_check
        %p217 = pneg %p216
      $region34: #{part_encoder_forward.9} parent=5 // pred_check_branch
        %219 = sbr.rel (%p217) target = $region36
      $region35: #{part_encoder_forward.9} parent=5 // pred_region
        // Predicated region
        $region37: #{part_encoder_forward.9} parent=35 // pred_check
          %p220 = pneg %p49
        $region38: #{part_encoder_forward.9} parent=35 // pred_check_branch
          %222 = sbr.rel (%p220) target = $region40
        $region39: #{part_encoder_forward.9} parent=35 // pred_region
          %s223 = smul.u32 2, %s23
          %p224 = scmp.lt.s32.totalorder %s22, 1
          %s225 = scalar_select %p224, %s22, 1
          %p226 = scmp.lt.s32.totalorder %s223, 1
          %s227 = scalar_select %p226, %s223, 1
          %s228 = smul.addr %s225, 2
          %s229 = sadd.s32 %s227, %s228
          %s230 = smul.addr %s229, 8
          %s231 = scalar_lea.vmem %s0, %s230
          %s232 = smul.u32 2, %s23
        $region40: #{part_encoder_forward.9} parent=35 // pred_fallthru
          _
      $region36: #{part_encoder_forward.9} parent=5 // pred_fallthru
        _
      %p233 = scmp.le.s32.totalorder 1, %s15
      %p234 = scmp.lt.s32.totalorder %s15, 3
      %p235 = pnand %p233, %p234
      %p236 = pneg %p235
      // Predicated region
      $region41: #{part_encoder_forward.9} parent=5 // pred_check
        _
      $region42: #{part_encoder_forward.9} parent=5 // pred_check_branch
        %238 = sbr.rel (%p235) target = $region44
      $region43: #{part_encoder_forward.9} parent=5 // pred_region
        %s239 = ssub.s32 %s15, 1
        %s240 = smul.u32 2, %s25
        %p241 = scmp.lt.s32.totalorder %s24, 1
        %s242 = scalar_select %p241, %s24, 1
        %p243 = scmp.lt.s32.totalorder %s240, 1
        %s244 = scalar_select %p243, %s240, 1
        %s245 = smul.addr %s242, 2
        %s246 = sadd.s32 %s244, %s245
        %s247 = smul.addr %s246, 8
        %s248 = scalar_lea.vmem %s0, %s247
        %p249 = pneg %p55
        %p250 = pneg %p52
        %p251 = pneg %p76
        %p252 = pneg %p73
        %p253 = pneg %p97
        %p254 = pneg %p94
        %p255 = pneg %p118
        %p256 = pneg %p115
        %p257 = pneg %p139
        %p258 = pneg %p136
        %p259 = pneg %p160
        %p260 = pneg %p157
        %p261 = pneg %p186
        %p262 = pneg %p183
        %s263 = sand.u32 %s173, 1
        %s264 = scalar_lea.sflag [#allocation4], %s263
        %s265 = sand.u32 %s173, 1
        %s266 = scalar_lea.vmem [#allocation3], %s265
        %s267 = smul.u32 2, %s25
        %p268 = scmp.lt.s32.totalorder %s24, 1
        %s269 = scalar_select %p268, %s24, 1
        %p270 = scmp.lt.s32.totalorder %s267, 1
        %s271 = scalar_select %p270, %s267, 1
        %s272 = smul.addr %s269, 2
        %s273 = sadd.s32 %s271, %s272
        %s274 = smul.addr %s273, 8
        %s275 = scalar_lea.vmem %s0, %s274
        %s276 = smul.u32 2, %s25
        %v277 = vld [vmem:[%s275] sm:$0xff]
        %v278 = vld [vmem:[%s275 + $0x8] sm:$0xff]
        %v279 = vld [vmem:[%s1] sm:$0x1]
        %v280 = vmul.f32 %v279, 0.03125
        %v281 = vld [vmem:[%s1 + $0x1] sm:$0x1]
        %v282 = vmul.f32 %v281, 0.03125
        %v283 = vmul.f32 %v280, %v280
        %v284 = vsub.f32 %v282, %v283
        %v285 = vmax.f32 %v284, 0.0
        %v286 = vld [vmem:[%s2] sm:$0x1]
        %v287 = vadd.f32 %v285, 1e-05
        %v288 = vrsqrt.pop %v287
        %v289 = vmul.f32 %v288, %v287
        %v290 = vmul.f32 %v289, %v288
        %v291 = vmul.f32 0.5, %v290
        %v292 = vsub.f32 1.5, %v291
        %v293 = vmul.f32 %v288, %v292
        %vm294 = vweird.f32 %v287
        %vm295 = vweird.f32 %v288
        %vm296 = vmor %vm294, %vm295
        %v297 = vsel %vm296, %v288, %v293
        %v298 = vmul.f32 %v286, %v297
        %v299 = vld [vmem:[%s3] sm:$0x1]
        %v300 = vmul.f32 %v280, %v298
        %v301 = vsub.f32 %v299, %v300
        %v303 = vperm.slane %v298, 0
        %v305 = vmul.f32 %v277, %v303
        %v306 = vmul.f32 %v278, %v303
        %v308 = vperm.slane %v301, 0
        %v310 = vadd.f32 %v305, %v308
        %v311 = vadd.f32 %v306, %v308
        %v312 = vmax.f32 %v310, 0.0
        %v313 = vmax.f32 %v311, 0.0
        %v314 = vmax.f32 %v312, %v313
        %v315 = vrot.slane %v314, 4
        %v316 = vmax.f32 %v314, %v315
        %v317 = vrot.slane %v316, 2
        %v318 = vmax.f32 %v316, %v317
        %v319 = vrot.slane %v318, 1
        %v320 = vmax.f32 %v318, %v319
        %p321 = scmp.eq.s32.totalorder %s25, 0
        // Predicated region
        $region45: #{part_encoder_forward.9} parent=43 // pred_check
          %p322 = pneg %p321
        $region46: #{part_encoder_forward.9} parent=43 // pred_check_branch
          %324 = sbr.rel (%p322) target = $region48
        $region47: #{part_encoder_forward.9} parent=43 // pred_region
          %325 = vst [vmem:[#allocation2] sm:$0x1] %v320
        $region48: #{part_encoder_forward.9} parent=43 // pred_fallthru
          _
        %p326 = scmp.gt.s32.totalorder %s25, 0
        // Predicated region
        $region49: #{part_encoder_forward.9} parent=43 // pred_check
          %p327 = pneg %p326
        $region50: #{part_encoder_forward.9} parent=43 // pred_check_branch
          %329 = sbr.rel (%p327) target = $region52
        $region51: #{part_encoder_forward.9} parent=43 // pred_region
          %v330 = vld [vmem:[#allocation2] sm:$0x1]
          %v331 = vmax.f32 %v330, %v320
          %332 = vst [vmem:[#allocation2] sm:$0x1] %v331
        $region52: #{part_encoder_forward.9} parent=43 // pred_fallthru
          _
        // Predicated region
        $region53: #{part_encoder_forward.9} parent=43 // pred_check
          %p333 = pneg %p321
        $region54: #{part_encoder_forward.9} parent=43 // pred_check_branch
          %335 = sbr.rel (%p333) target = $region56
        $region55: #{part_encoder_forward.9} parent=43 // pred_region
          %v336 = vld [vmem:[#allocation2] sm:$0x1]
          %v337 = vpack.c.bf16 %v336, %v336
          %v338 = vld [vmem:[%s4] sm:$0xf]
          %v339 = vld [vmem:[%s4 + $0x4] sm:$0xf]
          %v340 = vld [vmem:[%s4 + $0x8] sm:$0xf]
          %v341 = vld [vmem:[%s4 + $0xc] sm:$0xf]
          %v342 = vld [vmem:[%s4 + $0x10] sm:$0xf]
          %v343 = vld [vmem:[%s4 + $0x14] sm:$0xf]
          %v344 = vld [vmem:[%s4 + $0x18] sm:$0xf]
          %v345 = vld [vmem:[%s4 + $0x1c] sm:$0xf]
          %v346 = vld [vmem:[%s4 + $0x20] sm:$0xf]
          %v347 = vld [vmem:[%s4 + $0x24] sm:$0xf]
          %v348 = vld [vmem:[%s4 + $0x28] sm:$0xf]
          %v349 = vld [vmem:[%s4 + $0x2c] sm:$0xf]
          %v350 = vld [vmem:[%s4 + $0x30] sm:$0xf]
          %v351 = vld [vmem:[%s4 + $0x34] sm:$0xf]
          %v352 = vld [vmem:[%s4 + $0x38] sm:$0xf]
          %v353 = vld [vmem:[%s4 + $0x3c] sm:$0xf]
          %v354 = vld [vmem:[%s5] sm:$0x1]
          %v371 = vunpack.c.l.b16 %v338
          %v372 = vunpack.c.l.b16 %v339
          %v373 = vunpack.c.l.b16 %v340
          %v374 = vunpack.c.l.b16 %v341
          %v375 = vunpack.c.l.b16 %v342
          %v376 = vunpack.c.l.b16 %v343
          %v377 = vunpack.c.l.b16 %v344
          %v378 = vunpack.c.l.b16 %v345
          %v379 = vunpack.c.l.b16 %v346
          %v380 = vunpack.c.l.b16 %v347
          %v381 = vunpack.c.l.b16 %v348
          %v382 = vunpack.c.l.b16 %v349
          %v383 = vunpack.c.l.b16 %v350
          %v384 = vunpack.c.l.b16 %v351
          %v385 = vunpack.c.l.b16 %v352
          %v386 = vunpack.c.l.b16 %v353
          %v387 = vpack.c.b16 %v372, %v371
          %v388 = vpack.c.b16 %v374, %v373
          %v389 = vpack.c.b16 %v376, %v375
          %v390 = vpack.c.b16 %v378, %v377
          %v391 = vpack.c.b16 %v380, %v379
          %v392 = vpack.c.b16 %v382, %v381
          %v393 = vpack.c.b16 %v384, %v383
          %v394 = vpack.c.b16 %v386, %v385
          %403 = vmatpush.bf16.msra.mxu0 %v394
          %404 = vmatpush.bf16.msra.mxu0 %v393
          %405 = vmatpush.bf16.msra.mxu0 %v392
          %406 = vmatpush.bf16.msra.mxu0 %v391
          %407 = vmatpush.bf16.msra.mxu0 %v390
          %408 = vmatpush.bf16.msra.mxu0 %v389
          %409 = vmatpush.bf16.msra.mxu0 %v388
          %410 = vmatpush.bf16.msra.mxu0 %v387
          %411 = vmatmul.bf16.gmra.mxu0 %v337
          %v412 = vpop.f32.mrf.mxu0
          %v413 = vadd.f32 %v354, %v412
          %v414 = vpop.f32.mrf.mxu0
          %415 = vdwg.mxu0
          %416 = vst [vmem:[%s266] sm:$0x1] %v413
        $region56: #{part_encoder_forward.9} parent=43 // pred_fallthru
          _
        %s417 = sand.u32 %s173, 1
        %s418 = scalar_lea.sflag [#allocation4], %s417
        %s419 = sand.u32 %s173, 1
        %s420 = scalar_lea.vmem [#allocation3], %s419
        // Predicated region
        $region57: #{part_encoder_forward.9} parent=43 // pred_check
          %p421 = pneg %p183
        $region58: #{part_encoder_forward.9} parent=43 // pred_check_branch
          %423 = sbr.rel (%p421) target = $region60
        $region59: #{part_encoder_forward.9} parent=43 // pred_region
          %425 = vsyncadd %s418, 0
          %s426 = scalar_lea.hbm %s6, %s24
          %s428 = sshll.u32 %s420, 4
          %s429 = int_to_ptr.vmem [resolvable:$true] %s428
          %s430 = sshll.u32 %s426, 4
          %s431 = int_to_ptr.hbm [resolvable:$true] %s430
          %433 = dma.vmem_to_hbm [thread:$0]  %s429, 16, %s431, %s418
        $region60: #{part_encoder_forward.9} parent=43 // pred_fallthru
          _
      $region44: #{part_encoder_forward.9} parent=5 // pred_fallthru
        _
      %p434 = scmp.le.s32.totalorder 2, %s15
      // Predicated region
      $region61: #{part_encoder_forward.9} parent=5 // pred_check
        %p435 = pneg %p434
      $region62: #{part_encoder_forward.9} parent=5 // pred_check_branch
        %437 = sbr.rel (%p435) target = $region64
      $region63: #{part_encoder_forward.9} parent=5 // pred_region
        %s438 = ssub.s32 %s15, 2
        // Predicated region
        $region65: #{part_encoder_forward.9} parent=63 // pred_check
          %p439 = pneg %p189
        $region66: #{part_encoder_forward.9} parent=63 // pred_check_branch
          %441 = sbr.rel (%p439) target = $region68
        $region67: #{part_encoder_forward.9} parent=63 // pred_region
          %s442 = sand.u32 %s174, 1
          %s443 = scalar_lea.sflag [#allocation4], %s442
          %s444 = sand.u32 %s174, 1
          %s445 = scalar_lea.vmem [#allocation3], %s444
          %447 = dma.done %s443, 16
        $region68: #{part_encoder_forward.9} parent=63 // pred_fallthru
          _
      $region64: #{part_encoder_forward.9} parent=5 // pred_fallthru
        _
    $region6: #{part_encoder_forward.9} parent=1 // loop_footer
      %s19 = sadd.s32 1, %s15
    $region7: #{part_encoder_forward.9} parent=1 // loop_footer_branch
      %14 = sbr.rel target = $region3
    $region8: #{part_encoder_forward.9} parent=1 // loop_exit
      _
    %448 = vsyncpa [#allocation4], 1
    %s449 = scalar_lea.sflag [#allocation4], 1
    %450 = vsyncpa %s449, 1

</llo_original>
